<compile_context>
chip_gen: v7x
topology: tpu7x:2x2x1
jax: 0.10.0
libtpu: 0.0.40
codegen_flags: <defaults>
</compile_context>

<pallas_src>
import functools

import jax
import jax.numpy as jnp
from jax.experimental import pallas as pl
from jax.experimental.pallas import tpu as pltpu

_VMEM_LIMIT = 32 * 1024 * 1024   # safe on v5e/v6e (128 MiB) and v7x (64 MiB)


def _round_up(x, m):
    return (x + m - 1) // m * m


# ----------------------------------------------------------------------------
# Pallas kernels
# ----------------------------------------------------------------------------
def _linear_kernel(x_ref, w_ref, b_ref, o_ref, *, relu: bool):
    """o = act(x @ w + b).  x:(TM,K) bf16, w:(K,N) bf16, b:(1,N) f32."""
    x = x_ref[...].astype(jnp.bfloat16)
    acc = jnp.dot(x, w_ref[...], preferred_element_type=jnp.float32)
    acc = acc + b_ref[...]
    if relu:
        acc = jnp.maximum(acc, 0.0)
    o_ref[...] = acc.astype(o_ref.dtype)


def _head_kernel(feat_ref,
                 v1w_ref, v1b_ref, v2w_ref, v2b_ref, v3w_ref, v3b_ref,
                 a1w_ref, a1b_ref, a2w_ref, a2b_ref, a3w_ref, a3b_ref,
                 q_ref):
    """Fused dueling head: 6 linear layers + dueling combine, all in VMEM."""
    f = feat_ref[...].astype(jnp.bfloat16)

    def dense(x_bf16, w_ref, b_ref, relu):
        y = jnp.dot(x_bf16, w_ref[...], preferred_element_type=jnp.float32)
        y = y + b_ref[...]
        if relu:
            y = jnp.maximum(y, 0.0)
        return y

    # value stream (final layer has N=1 -> VPU multiply + XLU reduce, not MXU)
    hv = dense(f, v1w_ref, v1b_ref, True)
    hv = dense(hv.astype(jnp.bfloat16), v2w_ref, v2b_ref, True)
    v = jnp.sum(hv * v3w_ref[...], axis=1, keepdims=True) + v3b_ref[...]   # (TM,1)

    # advantage stream
    ha = dense(f, a1w_ref, a1b_ref, True)
    ha = dense(ha.astype(jnp.bfloat16), a2w_ref, a2b_ref, True)
    a = dense(ha.astype(jnp.bfloat16), a3w_ref, a3b_ref, False)            # (TM,A)

    q = v + a - jnp.mean(a, axis=1, keepdims=True)
    q_ref[...] = q.astype(q_ref.dtype)


# ----------------------------------------------------------------------------
# pallas_call wrappers
# ----------------------------------------------------------------------------
def pallas_linear(x, w_kn, b_1n, *, relu, out_dtype, tile_m=512):
    """act(x @ w + b), tiled over rows.  x:(M,K), w:(K,N) bf16, b:(1,N) f32."""
    M, K = x.shape
    N = w_kn.shape[1]

    if M > tile_m:
        tm = tile_m                                   # multiple of 8
        mp = _round_up(M, tm)
        if mp != M:
            x = jnp.pad(x, ((0, mp - M), (0, 0)))
    else:
        tm, mp = M, M                                 # single full-array block
    grid = (mp // tm,)

    cost = pl.CostEstimate(
        flops=2 * mp * K * N,
        transcendentals=0,
        bytes_accessed=mp * K * x.dtype.itemsize + K * N * 2
                       + mp * N * jnp.dtype(out_dtype).itemsize,
    )

    out = pl.pallas_call(
        functools.partial(_linear_kernel, relu=relu),
        out_shape=jax.ShapeDtypeStruct((mp, N), out_dtype),
        grid=grid,
        in_specs=[
            pl.BlockSpec((tm, K), lambda i: (i, 0)),   # row tile of activations
            pl.BlockSpec((K, N), lambda i: (0, 0)),    # weight stays resident
            pl.BlockSpec((1, N), lambda i: (0, 0)),    # bias stays resident
        ],
        out_specs=pl.BlockSpec((tm, N), lambda i: (i, 0)),
        compiler_params=pltpu.CompilerParams(
            dimension_semantics=("parallel",),
            vmem_limit_bytes=_VMEM_LIMIT,
        ),
        cost_estimate=cost,
    )(x, w_kn, b_1n)
    return out[:M] if mp != M else out


_HEAD_KEYS = ("v1_w", "v1_b", "v2_w", "v2_b", "v3_w", "v3_b",
              "a1_w", "a1_b", "a2_w", "a2_b", "a3_w", "a3_b")


def pallas_dueling_head(feat, kp, *, tile_m=256):
    """Fused value/advantage MLPs + dueling combine in one pallas_call."""
    M, K = feat.shape
    A = kp["a3_w"].shape[1]

    if M > tile_m:
        tm = tile_m
        mp = _round_up(M, tm)
        if mp != M:
            feat = jnp.pad(feat, ((0, mp - M), (0, 0)))
    else:
        tm, mp = M, M
    grid = (mp // tm,)

    w_args = [kp[k] for k in _HEAD_KEYS]
    resident = [pl.BlockSpec(a.shape, lambda i: (0, 0)) for a in w_args]

    q = pl.pallas_call(
        _head_kernel,
        out_shape=jax.ShapeDtypeStruct((mp, A), jnp.float32),
        grid=grid,
        in_specs=[pl.BlockSpec((tm, K), lambda i: (i, 0))] + resident,
        out_specs=pl.BlockSpec((tm, A), lambda i: (i, 0)),
        compiler_params=pltpu.CompilerParams(
            dimension_semantics=("parallel",),
            vmem_limit_bytes=_VMEM_LIMIT,
        ),
    )(feat, *w_args)
    return q[:M] if mp != M else q


# ----------------------------------------------------------------------------
# Conv = NHWC im2col (XLA glue) + Pallas matmul kernel
# ----------------------------------------------------------------------------
def _im2col_nhwc(x, kh, kw, stride):
    """x:(B,H,W,C) -> (B*OH*OW, kh*kw*C) patches with (i, j, c) column ordering."""
    B, H, W, C = x.shape
    OH = (H - kh) // stride + 1
    OW = (W - kw) // stride + 1
    cols = []
    for i in range(kh):
        for j in range(kw):
            cols.append(x[:, i:i + stride * OH:stride, j:j + stride * OW:stride, :])
    patches = jnp.concatenate(cols, axis=-1)                  # (B,OH,OW,kh*kw*C)
    return patches.reshape(B * OH * OW, kh * kw * C), OH, OW
    # TODO(synk): fold this gather into the Pallas conv kernel (bring the NHWC
    # receptive-field slab in via BlockSpec) to kill the patch-matrix HBM trip.


def conv2d_relu_nhwc(x, w_kn, b_1n, kh, kw, stride, *, tile_m=512):
    """Valid conv + ReLU.  x:(B,H,W,Cin) -> (B,OH,OW,Cout), bf16 activations."""
    B = x.shape[0]
    patches, OH, OW = _im2col_nhwc(x, kh, kw, stride)
    out = pallas_linear(patches, w_kn, b_1n, relu=True,
                        out_dtype=jnp.bfloat16, tile_m=tile_m)
    return out.reshape(B, OH, OW, -1)
    # TODO(synk): optionally zero-pad Cout to 128 lanes for unmasked vst stores.


# ----------------------------------------------------------------------------
# Parameters (PyTorch layout) + one-time kernel-layout prep
# ----------------------------------------------------------------------------
def conv_out_hw(h, w):
    oh1, ow1 = (h - 8) // 4 + 1, (w - 8) // 4 + 1
    oh2, ow2 = (oh1 - 4) // 2 + 1, (ow1 - 4) // 2 + 1
    return oh2 - 3 + 1, ow2 - 3 + 1


def init_params(key, input_shape, n_actions, hidden_dims):
    """PyTorch-layout parameters with nn.Conv2d/Linear-style uniform init."""
    C, H, W = input_shape

    def uniform_init(k, shape, fan_in):
        bound = 1.0 / jnp.sqrt(jnp.float32(fan_in))
        return jax.random.uniform(k, shape, jnp.float32, -bound, bound)

    keys = jax.random.split(key, 18)
    p = {}
    p["c1_w"] = uniform_init(keys[0], (32, C, 8, 8), C * 8 * 8)
    p["c1_b"] = uniform_init(keys[1], (32,), C * 8 * 8)
    p["c2_w"] = uniform_init(keys[2], (64, 32, 4, 4), 32 * 4 * 4)
    p["c2_b"] = uniform_init(keys[3], (64,), 32 * 4 * 4)
    p["c3_w"] = uniform_init(keys[4], (64, 64, 3, 3), 64 * 3 * 3)
    p["c3_b"] = uniform_init(keys[5], (64,), 64 * 3 * 3)

    oh3, ow3 = conv_out_hw(H, W)
    conv_out = 64 * oh3 * ow3
    h0, h1 = hidden_dims
    p["v1_w"] = uniform_init(keys[6], (h0, conv_out), conv_out)
    p["v1_b"] = uniform_init(keys[7], (h0,), conv_out)
    p["v2_w"] = uniform_init(keys[8], (h1, h0), h0)
    p["v2_b"] = uniform_init(keys[9], (h1,), h0)
    p["v3_w"] = uniform_init(keys[10], (1, h1), h1)
    p["v3_b"] = uniform_init(keys[11], (1,), h1)
    p["a1_w"] = uniform_init(keys[12], (h0, conv_out), conv_out)
    p["a1_b"] = uniform_init(keys[13], (h0,), conv_out)
    p["a2_w"] = uniform_init(keys[14], (h1, h0), h0)
    p["a2_b"] = uniform_init(keys[15], (h1,), h0)
    p["a3_w"] = uniform_init(keys[16], (n_actions, h1), h1)
    p["a3_b"] = uniform_init(keys[17], (n_actions,), h1)
    return p


def prepare_params(p, input_shape):
    """One-time layout plumbing: transpose / permute / cast weights for kernels."""
    _, H, W = input_shape
    oh3, ow3 = conv_out_hw(H, W)

    def conv_w(w):            # (Cout,Cin,kh,kw) -> (kh*kw*Cin, Cout), (i,j,c) rows
        cout, cin, kh, kw = w.shape
        return jnp.transpose(w, (2, 3, 1, 0)).reshape(kh * kw * cin, cout)

    def fc1_w(w):             # NCHW-flatten columns -> NHWC-flatten rows, (K,N) bf16
        n = w.shape[0]
        w = w.reshape(n, 64, oh3, ow3).transpose(0, 2, 3, 1).reshape(n, -1)
        return jnp.asarray(w.T, jnp.bfloat16)

    def fc_w(w):              # (N,K) -> (K,N) bf16
        return jnp.asarray(w.T, jnp.bfloat16)

    def bias(b):              # (N,) -> (1,N) f32
        return jnp.asarray(b.reshape(1, -1), jnp.float32)

    return {
        # c1 weight kept f32: the data-dependent /255 scale is folded into it per
        # forward call, then cast to bf16 (the weight is tiny).
        "c1_w": conv_w(p["c1_w"]).astype(jnp.float32), "c1_b": bias(p["c1_b"]),
        "c2_w": conv_w(p["c2_w"]).astype(jnp.bfloat16), "c2_b": bias(p["c2_b"]),
        "c3_w": conv_w(p["c3_w"]).astype(jnp.bfloat16), "c3_b": bias(p["c3_b"]),
        "v1_w": fc1_w(p["v1_w"]), "v1_b": bias(p["v1_b"]),
        "v2_w": fc_w(p["v2_w"]),  "v2_b": bias(p["v2_b"]),
        # v3 (N=1) is computed as multiply+reduce in-kernel -> keep (1,h1) f32.
        "v3_w": jnp.asarray(p["v3_w"], jnp.float32), "v3_b": bias(p["v3_b"]),
        "a1_w": fc1_w(p["a1_w"]), "a1_b": bias(p["a1_b"]),
        "a2_w": fc_w(p["a2_w"]),  "a2_b": bias(p["a2_b"]),
        "a3_w": fc_w(p["a3_w"]),  "a3_b": bias(p["a3_b"]),
    }


# ----------------------------------------------------------------------------
# DQNNetwork forward (dueling=True)
# ----------------------------------------------------------------------------
def dqn_forward(kp, x):
    """x: (B, C, H, W) float32 (PyTorch NCHW). Returns Q-values (B, n_actions) f32."""
    # `if x.max() > 1.0: x = x / 255.0`  ->  fold the scale into the (linear)
    # conv1 weights instead of touching every pixel: conv(x*s, W) == conv(x, s*W).
    scale = jnp.where(jnp.max(x) > 1.0, jnp.float32(1.0 / 255.0), jnp.float32(1.0))
    c1_w = (kp["c1_w"] * scale).astype(jnp.bfloat16)

    x = jnp.transpose(x, (0, 2, 3, 1)).astype(jnp.bfloat16)    # NCHW -> NHWC once

    x = conv2d_relu_nhwc(x, c1_w, kp["c1_b"], 8, 8, 4)
    x = conv2d_relu_nhwc(x, kp["c2_w"], kp["c2_b"], 4, 4, 2)
    x = conv2d_relu_nhwc(x, kp["c3_w"], kp["c3_b"], 3, 3, 1)

    feat = x.reshape(x.shape[0], -1)    # NHWC flatten; fc1 weights pre-permuted
    return pallas_dueling_head(feat, kp)


if __name__ == "__main__":
    # Small, module-consistent shapes: input (4, 36, 36) -> conv out 1x1x64,
    # hidden_dims = [64, 64], n_actions = 4, batch = 2.
    input_shape = (4, 36, 36)
    n_actions = 4
    hidden_dims = [64, 64]
    batch = 2

    key = jax.random.PRNGKey(0)
    pkey, xkey = jax.random.split(key)
    torch_params = init_params(pkey, input_shape, n_actions, hidden_dims)
    kparams = prepare_params(torch_params, input_shape)

    # Raw "pixel" inputs in [0, 255] so the /255 normalization branch is taken.
    x = jax.random.uniform(xkey, (batch,) + input_shape, jnp.float32, 0.0, 255.0)

    fwd = jax.jit(dqn_forward)
    q_values = fwd(kparams, x)
    jax.block_until_ready(q_values)
    assert q_values.shape == (batch, n_actions)
    assert q_values.dtype == jnp.float32
    assert bool(jnp.all(jnp.isfinite(q_values)))
    print("KERNEL_OK")
</pallas_src>

<mosaic_0001>
module attributes {stable_mosaic.version = 11 : i64} {
  func.func @_linear_kernel(%arg0: i32, %arg1: memref<128x256xbf16, #tpu.memory_space<vmem>>, %arg2: memref<256x32xbf16, #tpu.memory_space<vmem>>, %arg3: memref<1x32xf32, #tpu.memory_space<vmem>>, %arg4: memref<128x32xbf16, #tpu.memory_space<vmem>>) attributes {dimension_semantics = [#tpu.dimension_semantics<parallel>], iteration_bounds = array<i64: 1>, scalar_prefetch = 0 : i64, scratch_operands = 0 : i64, tpu.core_type = #tpu.core_type<tc>, window_params = [{transform_indices = @transform_0, window_bounds = array<i64: 128, 256>}, {pipeline_mode = #tpu.pipeline_mode<synchronous>, transform_indices = @transform_1, window_bounds = array<i64: 256, 32>}, {pipeline_mode = #tpu.pipeline_mode<synchronous>, transform_indices = @transform_2, window_bounds = array<i64: 1, 32>}, {transform_indices = @transform_3, window_bounds = array<i64: 128, 32>}]} {
    %c0 = arith.constant 0 : index
    %c0_0 = arith.constant 0 : index
    %0 = vector.load %arg1[%c0, %c0_0] : memref<128x256xbf16, #tpu.memory_space<vmem>>, vector<128x256xbf16>
    %c0_1 = arith.constant 0 : index
    %c0_2 = arith.constant 0 : index
    %1 = vector.load %arg2[%c0_1, %c0_2] : memref<256x32xbf16, #tpu.memory_space<vmem>>, vector<256x32xbf16>
    %cst = arith.constant dense<0.000000e+00> : vector<128x32xf32>
    %2 = tpu.matmul %0, %1, %cst {dimension_numbers = #tpu.dot_dimension_numbers<[1], [0], [0], [1], [0, 0, 1, 1], [], []>} : vector<128x256xbf16>, vector<256x32xbf16>, vector<128x32xf32> -> vector<128x32xf32>
    %c0_3 = arith.constant 0 : index
    %c0_4 = arith.constant 0 : index
    %3 = vector.load %arg3[%c0_3, %c0_4] : memref<1x32xf32, #tpu.memory_space<vmem>>, vector<1x32xf32>
    %4 = vector.broadcast %3 : vector<1x32xf32> to vector<128x32xf32>
    %5 = arith.addf %2, %4 : vector<128x32xf32>
    %cst_5 = arith.constant 0.000000e+00 : f32
    %6 = vector.broadcast %cst_5 : f32 to vector<128x32xf32>
    %7 = arith.maximumf %5, %6 : vector<128x32xf32>
    %8 = arith.truncf %7 : vector<128x32xf32> to vector<128x32xbf16>
    %c0_6 = arith.constant 0 : index
    %c0_7 = arith.constant 0 : index
    %9 = vector.load %arg4[%c0_6, %c0_7] : memref<128x32xbf16, #tpu.memory_space<vmem>>, vector<128x32xbf16>
    tpu.vector_store %arg4[%c0_6, %c0_7], %8 {strides = array<i32>} : memref<128x32xbf16, #tpu.memory_space<vmem>>, vector<128x32xbf16>,
    return
  }
  func.func @transform_0(%arg0: i32) -> (i32, i32) {
    %c0_i32 = arith.constant 0 : i32
    %c0_i32_0 = arith.constant 0 : i32
    return %arg0, %c0_i32 : i32, i32
  }
  func.func @transform_1(%arg0: i32) -> (i32, i32) {
    %c0_i32 = arith.constant 0 : i32
    %c0_i32_0 = arith.constant 0 : i32
    %c0_i32_1 = arith.constant 0 : i32
    return %c0_i32, %c0_i32_0 : i32, i32
  }
  func.func @transform_2(%arg0: i32) -> (i32, i32) {
    %c0_i32 = arith.constant 0 : i32
    %c0_i32_0 = arith.constant 0 : i32
    %c0_i32_1 = arith.constant 0 : i32
    return %c0_i32, %c0_i32_0 : i32, i32
  }
  func.func @transform_3(%arg0: i32) -> (i32, i32) {
    %c0_i32 = arith.constant 0 : i32
    %c0_i32_0 = arith.constant 0 : i32
    return %arg0, %c0_i32 : i32, i32
  }
}

module attributes {stable_mosaic.version = 11 : i64} {
  func.func @_linear_kernel(%arg0: i32, %arg1: memref<18x512xbf16, #tpu.memory_space<vmem>>, %arg2: memref<512x64xbf16, #tpu.memory_space<vmem>>, %arg3: memref<1x64xf32, #tpu.memory_space<vmem>>, %arg4: memref<18x64xbf16, #tpu.memory_space<vmem>>) attributes {dimension_semantics = [#tpu.dimension_semantics<parallel>], iteration_bounds = array<i64: 1>, scalar_prefetch = 0 : i64, scratch_operands = 0 : i64, tpu.core_type = #tpu.core_type<tc>, window_params = [{transform_indices = @transform_0, window_bounds = array<i64: 18, 512>}, {pipeline_mode = #tpu.pipeline_mode<synchronous>, transform_indices = @transform_1, window_bounds = array<i64: 512, 64>}, {pipeline_mode = #tpu.pipeline_mode<synchronous>, transform_indices = @transform_2, window_bounds = array<i64: 1, 64>}, {transform_indices = @transform_3, window_bounds = array<i64: 18, 64>}]} {
    %c0 = arith.constant 0 : index
    %c0_0 = arith.constant 0 : index
    %0 = vector.load %arg1[%c0, %c0_0] : memref<18x512xbf16, #tpu.memory_space<vmem>>, vector<18x512xbf16>
    %c0_1 = arith.constant 0 : index
    %c0_2 = arith.constant 0 : index
    %1 = vector.load %arg2[%c0_1, %c0_2] : memref<512x64xbf16, #tpu.memory_space<vmem>>, vector<512x64xbf16>
    %cst = arith.constant dense<0.000000e+00> : vector<18x64xf32>
    %2 = tpu.matmul %0, %1, %cst {dimension_numbers = #tpu.dot_dimension_numbers<[1], [0], [0], [1], [0, 0, 1, 1], [], []>} : vector<18x512xbf16>, vector<512x64xbf16>, vector<18x64xf32> -> vector<18x64xf32>
    %c0_3 = arith.constant 0 : index
    %c0_4 = arith.constant 0 : index
    %3 = vector.load %arg3[%c0_3, %c0_4] : memref<1x64xf32, #tpu.memory_space<vmem>>, vector<1x64xf32>
    %4 = vector.broadcast %3 : vector<1x64xf32> to vector<18x64xf32>
    %5 = arith.addf %2, %4 : vector<18x64xf32>
    %cst_5 = arith.constant 0.000000e+00 : f32
    %6 = vector.broadcast %cst_5 : f32 to vector<18x64xf32>
    %7 = arith.maximumf %5, %6 : vector<18x64xf32>
    %8 = arith.truncf %7 : vector<18x64xf32> to vector<18x64xbf16>
    %c0_6 = arith.constant 0 : index
    %c0_7 = arith.constant 0 : index
    %9 = vector.load %arg4[%c0_6, %c0_7] : memref<18x64xbf16, #tpu.memory_space<vmem>>, vector<18x64xbf16>
    tpu.vector_store %arg4[%c0_6, %c0_7], %8 {strides = array<i32>} : memref<18x64xbf16, #tpu.memory_space<vmem>>, vector<18x64xbf16>,
    return
  }
  func.func @transform_0(%arg0: i32) -> (i32, i32) {
    %c0_i32 = arith.constant 0 : i32
    %c0_i32_0 = arith.constant 0 : i32
    return %arg0, %c0_i32 : i32, i32
  }
  func.func @transform_1(%arg0: i32) -> (i32, i32) {
    %c0_i32 = arith.constant 0 : i32
    %c0_i32_0 = arith.constant 0 : i32
    %c0_i32_1 = arith.constant 0 : i32
    return %c0_i32, %c0_i32_0 : i32, i32
  }
  func.func @transform_2(%arg0: i32) -> (i32, i32) {
    %c0_i32 = arith.constant 0 : i32
    %c0_i32_0 = arith.constant 0 : i32
    %c0_i32_1 = arith.constant 0 : i32
    return %c0_i32, %c0_i32_0 : i32, i32
  }
  func.func @transform_3(%arg0: i32) -> (i32, i32) {
    %c0_i32 = arith.constant 0 : i32
    %c0_i32_0 = arith.constant 0 : i32
    return %arg0, %c0_i32 : i32, i32
  }
}

module attributes {stable_mosaic.version = 11 : i64} {
  func.func @_linear_kernel(%arg0: i32, %arg1: memref<2x576xbf16, #tpu.memory_space<vmem>>, %arg2: memref<576x64xbf16, #tpu.memory_space<vmem>>, %arg3: memref<1x64xf32, #tpu.memory_space<vmem>>, %arg4: memref<2x64xbf16, #tpu.memory_space<vmem>>) attributes {dimension_semantics = [#tpu.dimension_semantics<parallel>], iteration_bounds = array<i64: 1>, scalar_prefetch = 0 : i64, scratch_operands = 0 : i64, tpu.core_type = #tpu.core_type<tc>, window_params = [{transform_indices = @transform_0, window_bounds = array<i64: 2, 576>}, {pipeline_mode = #tpu.pipeline_mode<synchronous>, transform_indices = @transform_1, window_bounds = array<i64: 576, 64>}, {pipeline_mode = #tpu.pipeline_mode<synchronous>, transform_indices = @transform_2, window_bounds = array<i64: 1, 64>}, {transform_indices = @transform_3, window_bounds = array<i64: 2, 64>}]} {
    %c0 = arith.constant 0 : index
    %c0_0 = arith.constant 0 : index
    %0 = vector.load %arg1[%c0, %c0_0] : memref<2x576xbf16, #tpu.memory_space<vmem>>, vector<2x576xbf16>
    %c0_1 = arith.constant 0 : index
    %c0_2 = arith.constant 0 : index
    %1 = vector.load %arg2[%c0_1, %c0_2] : memref<576x64xbf16, #tpu.memory_space<vmem>>, vector<576x64xbf16>
    %cst = arith.constant dense<0.000000e+00> : vector<2x64xf32>
    %2 = tpu.matmul %0, %1, %cst {dimension_numbers = #tpu.dot_dimension_numbers<[1], [0], [0], [1], [0, 0, 1, 1], [], []>} : vector<2x576xbf16>, vector<576x64xbf16>, vector<2x64xf32> -> vector<2x64xf32>
    %c0_3 = arith.constant 0 : index
    %c0_4 = arith.constant 0 : index
    %3 = vector.load %arg3[%c0_3, %c0_4] : memref<1x64xf32, #tpu.memory_space<vmem>>, vector<1x64xf32>
    %4 = vector.broadcast %3 : vector<1x64xf32> to vector<2x64xf32>
    %5 = arith.addf %2, %4 : vector<2x64xf32>
    %cst_5 = arith.constant 0.000000e+00 : f32
    %6 = vector.broadcast %cst_5 : f32 to vector<2x64xf32>
    %7 = arith.maximumf %5, %6 : vector<2x64xf32>
    %8 = arith.truncf %7 : vector<2x64xf32> to vector<2x64xbf16>
    %c0_6 = arith.constant 0 : index
    %c0_7 = arith.constant 0 : index
    %9 = vector.load %arg4[%c0_6, %c0_7] : memref<2x64xbf16, #tpu.memory_space<vmem>>, vector<2x64xbf16>
    tpu.vector_store %arg4[%c0_6, %c0_7], %8 {strides = array<i32>} : memref<2x64xbf16, #tpu.memory_space<vmem>>, vector<2x64xbf16>,
    return
  }
  func.func @transform_0(%arg0: i32) -> (i32, i32) {
    %c0_i32 = arith.constant 0 : i32
    %c0_i32_0 = arith.constant 0 : i32
    return %arg0, %c0_i32 : i32, i32
  }
  func.func @transform_1(%arg0: i32) -> (i32, i32) {
    %c0_i32 = arith.constant 0 : i32
    %c0_i32_0 = arith.constant 0 : i32
    %c0_i32_1 = arith.constant 0 : i32
    return %c0_i32, %c0_i32_0 : i32, i32
  }
  func.func @transform_2(%arg0: i32) -> (i32, i32) {
    %c0_i32 = arith.constant 0 : i32
    %c0_i32_0 = arith.constant 0 : i32
    %c0_i32_1 = arith.constant 0 : i32
    return %c0_i32, %c0_i32_0 : i32, i32
  }
  func.func @transform_3(%arg0: i32) -> (i32, i32) {
    %c0_i32 = arith.constant 0 : i32
    %c0_i32_0 = arith.constant 0 : i32
    return %arg0, %c0_i32 : i32, i32
  }
}

module attributes {stable_mosaic.version = 11 : i64} {
  func.func @_head_kernel(%arg0: i32, %arg1: memref<2x64xbf16, #tpu.memory_space<vmem>>, %arg2: memref<64x64xbf16, #tpu.memory_space<vmem>>, %arg3: memref<1x64xf32, #tpu.memory_space<vmem>>, %arg4: memref<64x64xbf16, #tpu.memory_space<vmem>>, %arg5: memref<1x64xf32, #tpu.memory_space<vmem>>, %arg6: memref<1x64xf32, #tpu.memory_space<vmem>>, %arg7: memref<1x1xf32, #tpu.memory_space<vmem>>, %arg8: memref<64x64xbf16, #tpu.memory_space<vmem>>, %arg9: memref<1x64xf32, #tpu.memory_space<vmem>>, %arg10: memref<64x64xbf16, #tpu.memory_space<vmem>>, %arg11: memref<1x64xf32, #tpu.memory_space<vmem>>, %arg12: memref<64x4xbf16, #tpu.memory_space<vmem>>, %arg13: memref<1x4xf32, #tpu.memory_space<vmem>>, %arg14: memref<2x4xf32, #tpu.memory_space<vmem>>) attributes {dimension_semantics = [#tpu.dimension_semantics<parallel>], iteration_bounds = array<i64: 1>, scalar_prefetch = 0 : i64, scratch_operands = 0 : i64, tpu.core_type = #tpu.core_type<tc>, window_params = [{transform_indices = @transform_0, window_bounds = array<i64: 2, 64>}, {pipeline_mode = #tpu.pipeline_mode<synchronous>, transform_indices = @transform_1, window_bounds = array<i64: 64, 64>}, {pipeline_mode = #tpu.pipeline_mode<synchronous>, transform_indices = @transform_2, window_bounds = array<i64: 1, 64>}, {pipeline_mode = #tpu.pipeline_mode<synchronous>, transform_indices = @transform_3, window_bounds = array<i64: 64, 64>}, {pipeline_mode = #tpu.pipeline_mode<synchronous>, transform_indices = @transform_4, window_bounds = array<i64: 1, 64>}, {pipeline_mode = #tpu.pipeline_mode<synchronous>, transform_indices = @transform_5, window_bounds = array<i64: 1, 64>}, {pipeline_mode = #tpu.pipeline_mode<synchronous>, transform_indices = @transform_6, window_bounds = array<i64: 1, 1>}, {pipeline_mode = #tpu.pipeline_mode<synchronous>, transform_indices = @transform_7, window_bounds = array<i64: 64, 64>}, {pipeline_mode = #tpu.pipeline_mode<synchronous>, transform_indices = @transform_8, window_bounds = array<i64: 1, 64>}, {pipeline_mode = #tpu.pipeline_mode<synchronous>, transform_indices = @transform_9, window_bounds = array<i64: 64, 64>}, {pipeline_mode = #tpu.pipeline_mode<synchronous>, transform_indices = @transform_10, window_bounds = array<i64: 1, 64>}, {pipeline_mode = #tpu.pipeline_mode<synchronous>, transform_indices = @transform_11, window_bounds = array<i64: 64, 4>}, {pipeline_mode = #tpu.pipeline_mode<synchronous>, transform_indices = @transform_12, window_bounds = array<i64: 1, 4>}, {transform_indices = @transform_13, window_bounds = array<i64: 2, 4>}]} {
    %c0 = arith.constant 0 : index
    %c0_0 = arith.constant 0 : index
    %0 = vector.load %arg1[%c0, %c0_0] : memref<2x64xbf16, #tpu.memory_space<vmem>>, vector<2x64xbf16>
    %c0_1 = arith.constant 0 : index
    %c0_2 = arith.constant 0 : index
    %1 = vector.load %arg2[%c0_1, %c0_2] : memref<64x64xbf16, #tpu.memory_space<vmem>>, vector<64x64xbf16>
    %cst = arith.constant dense<0.000000e+00> : vector<2x64xf32>
    %2 = tpu.matmul %0, %1, %cst {dimension_numbers = #tpu.dot_dimension_numbers<[1], [0], [0], [1], [0, 0, 1, 1], [], []>} : vector<2x64xbf16>, vector<64x64xbf16>, vector<2x64xf32> -> vector<2x64xf32>
    %c0_3 = arith.constant 0 : index
    %c0_4 = arith.constant 0 : index
    %3 = vector.load %arg3[%c0_3, %c0_4] : memref<1x64xf32, #tpu.memory_space<vmem>>, vector<1x64xf32>
    %4 = vector.broadcast %3 : vector<1x64xf32> to vector<2x64xf32>
    %5 = arith.addf %2, %4 : vector<2x64xf32>
    %cst_5 = arith.constant 0.000000e+00 : f32
    %6 = vector.broadcast %cst_5 : f32 to vector<2x64xf32>
    %7 = arith.maximumf %5, %6 : vector<2x64xf32>
    %8 = arith.truncf %7 : vector<2x64xf32> to vector<2x64xbf16>
    %c0_6 = arith.constant 0 : index
    %c0_7 = arith.constant 0 : index
    %9 = vector.load %arg4[%c0_6, %c0_7] : memref<64x64xbf16, #tpu.memory_space<vmem>>, vector<64x64xbf16>
    %cst_8 = arith.constant dense<0.000000e+00> : vector<2x64xf32>
    %10 = tpu.matmul %8, %9, %cst_8 {dimension_numbers = #tpu.dot_dimension_numbers<[1], [0], [0], [1], [0, 0, 1, 1], [], []>} : vector<2x64xbf16>, vector<64x64xbf16>, vector<2x64xf32> -> vector<2x64xf32>
    %c0_9 = arith.constant 0 : index
    %c0_10 = arith.constant 0 : index
    %11 = vector.load %arg5[%c0_9, %c0_10] : memref<1x64xf32, #tpu.memory_space<vmem>>, vector<1x64xf32>
    %12 = vector.broadcast %11 : vector<1x64xf32> to vector<2x64xf32>
    %13 = arith.addf %10, %12 : vector<2x64xf32>
    %cst_11 = arith.constant 0.000000e+00 : f32
    %14 = vector.broadcast %cst_11 : f32 to vector<2x64xf32>
    %15 = arith.maximumf %13, %14 : vector<2x64xf32>
    %c0_12 = arith.constant 0 : index
    %c0_13 = arith.constant 0 : index
    %16 = vector.load %arg6[%c0_12, %c0_13] : memref<1x64xf32, #tpu.memory_space<vmem>>, vector<1x64xf32>
    %17 = vector.broadcast %16 : vector<1x64xf32> to vector<2x64xf32>
    %18 = arith.mulf %15, %17 : vector<2x64xf32>
    %cst_14 = arith.constant dense<0.000000e+00> : vector<2xf32>
    %19 = vector.multi_reduction <add>, %18, %cst_14 [1] : vector<2x64xf32> to vector<2xf32>
    %20 = vector.shape_cast %19 : vector<2xf32> to vector<2x1xf32>
    %c0_15 = arith.constant 0 : index
    %c0_16 = arith.constant 0 : index
    %21 = vector.load %arg7[%c0_15, %c0_16] : memref<1x1xf32, #tpu.memory_space<vmem>>, vector<1x1xf32>
    %22 = vector.broadcast %21 : vector<1x1xf32> to vector<2x1xf32>
    %23 = arith.addf %20, %22 : vector<2x1xf32>
    %c0_17 = arith.constant 0 : index
    %c0_18 = arith.constant 0 : index
    %24 = vector.load %arg8[%c0_17, %c0_18] : memref<64x64xbf16, #tpu.memory_space<vmem>>, vector<64x64xbf16>
    %cst_19 = arith.constant dense<0.000000e+00> : vector<2x64xf32>
    %25 = tpu.matmul %0, %24, %cst_19 {dimension_numbers = #tpu.dot_dimension_numbers<[1], [0], [0], [1], [0, 0, 1, 1], [], []>} : vector<2x64xbf16>, vector<64x64xbf16>, vector<2x64xf32> -> vector<2x64xf32>
    %c0_20 = arith.constant 0 : index
    %c0_21 = arith.constant 0 : index
    %26 = vector.load %arg9[%c0_20, %c0_21] : memref<1x64xf32, #tpu.memory_space<vmem>>, vector<1x64xf32>
    %27 = vector.broadcast %26 : vector<1x64xf32> to vector<2x64xf32>
    %28 = arith.addf %25, %27 : vector<2x64xf32>
    %cst_22 = arith.constant 0.000000e+00 : f32
    %29 = vector.broadcast %cst_22 : f32 to vector<2x64xf32>
    %30 = arith.maximumf %28, %29 : vector<2x64xf32>
    %31 = arith.truncf %30 : vector<2x64xf32> to vector<2x64xbf16>
    %c0_23 = arith.constant 0 : index
    %c0_24 = arith.constant 0 : index
    %32 = vector.load %arg10[%c0_23, %c0_24] : memref<64x64xbf16, #tpu.memory_space<vmem>>, vector<64x64xbf16>
    %cst_25 = arith.constant dense<0.000000e+00> : vector<2x64xf32>
    %33 = tpu.matmul %31, %32, %cst_25 {dimension_numbers = #tpu.dot_dimension_numbers<[1], [0], [0], [1], [0, 0, 1, 1], [], []>} : vector<2x64xbf16>, vector<64x64xbf16>, vector<2x64xf32> -> vector<2x64xf32>
    %c0_26 = arith.constant 0 : index
    %c0_27 = arith.constant 0 : index
    %34 = vector.load %arg11[%c0_26, %c0_27] : memref<1x64xf32, #tpu.memory_space<vmem>>, vector<1x64xf32>
    %35 = vector.broadcast %34 : vector<1x64xf32> to vector<2x64xf32>
    %36 = arith.addf %33, %35 : vector<2x64xf32>
    %cst_28 = arith.constant 0.000000e+00 : f32
    %37 = vector.broadcast %cst_28 : f32 to vector<2x64xf32>
    %38 = arith.maximumf %36, %37 : vector<2x64xf32>
    %39 = arith.truncf %38 : vector<2x64xf32> to vector<2x64xbf16>
    %c0_29 = arith.constant 0 : index
    %c0_30 = arith.constant 0 : index
    %40 = vector.load %arg12[%c0_29, %c0_30] : memref<64x4xbf16, #tpu.memory_space<vmem>>, vector<64x4xbf16>
    %cst_31 = arith.constant dense<0.000000e+00> : vector<2x4xf32>
    %41 = tpu.matmul %39, %40, %cst_31 {dimension_numbers = #tpu.dot_dimension_numbers<[1], [0], [0], [1], [0, 0, 1, 1], [], []>} : vector<2x64xbf16>, vector<64x4xbf16>, vector<2x4xf32> -> vector<2x4xf32>
    %c0_32 = arith.constant 0 : index
    %c0_33 = arith.constant 0 : index
    %42 = vector.load %arg13[%c0_32, %c0_33] : memref<1x4xf32, #tpu.memory_space<vmem>>, vector<1x4xf32>
    %43 = vector.broadcast %42 : vector<1x4xf32> to vector<2x4xf32>
    %44 = arith.addf %41, %43 : vector<2x4xf32>
    %45 = vector.broadcast %23 : vector<2x1xf32> to vector<2x4xf32>
    %46 = arith.addf %45, %44 : vector<2x4xf32>
    %cst_34 = arith.constant dense<0.000000e+00> : vector<2xf32>
    %47 = vector.multi_reduction <add>, %44, %cst_34 [1] : vector<2x4xf32> to vector<2xf32>
    %48 = vector.shape_cast %47 : vector<2xf32> to vector<2x1xf32>
    %cst_35 = arith.constant 4.000000e+00 : f32
    %49 = vector.broadcast %cst_35 : f32 to vector<2x1xf32>
    %50 = arith.divf %48, %49 : vector<2x1xf32>
    %51 = vector.broadcast %50 : vector<2x1xf32> to vector<2x4xf32>
    %52 = arith.subf %46, %51 : vector<2x4xf32>
    %c0_36 = arith.constant 0 : index
    %c0_37 = arith.constant 0 : index
    %53 = vector.load %arg14[%c0_36, %c0_37] : memref<2x4xf32, #tpu.memory_space<vmem>>, vector<2x4xf32>
    tpu.vector_store %arg14[%c0_36, %c0_37], %52 {strides = array<i32>} : memref<2x4xf32, #tpu.memory_space<vmem>>, vector<2x4xf32>,
    return
  }
  func.func @transform_0(%arg0: i32) -> (i32, i32) {
    %c0_i32 = arith.constant 0 : i32
    %c0_i32_0 = arith.constant 0 : i32
    return %arg0, %c0_i32 : i32, i32
  }
  func.func @transform_1(%arg0: i32) -> (i32, i32) {
    %c0_i32 = arith.constant 0 : i32
    %c0_i32_0 = arith.constant 0 : i32
    %c0_i32_1 = arith.constant 0 : i32
    return %c0_i32, %c0_i32_0 : i32, i32
  }
  func.func @transform_2(%arg0: i32) -> (i32, i32) {
    %c0_i32 = arith.constant 0 : i32
    %c0_i32_0 = arith.constant 0 : i32
    %c0_i32_1 = arith.constant 0 : i32
    return %c0_i32, %c0_i32_0 : i32, i32
  }
  func.func @transform_3(%arg0: i32) -> (i32, i32) {
    %c0_i32 = arith.constant 0 : i32
    %c0_i32_0 = arith.constant 0 : i32
    %c0_i32_1 = arith.constant 0 : i32
    return %c0_i32, %c0_i32_0 : i32, i32
  }
  func.func @transform_4(%arg0: i32) -> (i32, i32) {
    %c0_i32 = arith.constant 0 : i32
    %c0_i32_0 = arith.constant 0 : i32
    %c0_i32_1 = arith.constant 0 : i32
    return %c0_i32, %c0_i32_0 : i32, i32
  }
  func.func @transform_5(%arg0: i32) -> (i32, i32) {
    %c0_i32 = arith.constant 0 : i32
    %c0_i32_0 = arith.constant 0 : i32
    %c0_i32_1 = arith.constant 0 : i32
    return %c0_i32, %c0_i32_0 : i32, i32
  }
  func.func @transform_6(%arg0: i32) -> (i32, i32) {
    %c0_i32 = arith.constant 0 : i32
    %c0_i32_0 = arith.constant 0 : i32
    %c0_i32_1 = arith.constant 0 : i32
    return %c0_i32, %c0_i32_0 : i32, i32
  }
  func.func @transform_7(%arg0: i32) -> (i32, i32) {
    %c0_i32 = arith.constant 0 : i32
    %c0_i32_0 = arith.constant 0 : i32
    %c0_i32_1 = arith.constant 0 : i32
    return %c0_i32, %c0_i32_0 : i32, i32
  }
  func.func @transform_8(%arg0: i32) -> (i32, i32) {
    %c0_i32 = arith.constant 0 : i32
    %c0_i32_0 = arith.constant 0 : i32
    %c0_i32_1 = arith.constant 0 : i32
    return %c0_i32, %c0_i32_0 : i32, i32
  }
  func.func @transform_9(%arg0: i32) -> (i32, i32) {
    %c0_i32 = arith.constant 0 : i32
    %c0_i32_0 = arith.constant 0 : i32
    %c0_i32_1 = arith.constant 0 : i32
    return %c0_i32, %c0_i32_0 : i32, i32
  }
  func.func @transform_10(%arg0: i32) -> (i32, i32) {
    %c0_i32 = arith.constant 0 : i32
    %c0_i32_0 = arith.constant 0 : i32
    %c0_i32_1 = arith.constant 0 : i32
    return %c0_i32, %c0_i32_0 : i32, i32
  }
  func.func @transform_11(%arg0: i32) -> (i32, i32) {
    %c0_i32 = arith.constant 0 : i32
    %c0_i32_0 = arith.constant 0 : i32
    %c0_i32_1 = arith.constant 0 : i32
    return %c0_i32, %c0_i32_0 : i32, i32
  }
  func.func @transform_12(%arg0: i32) -> (i32, i32) {
    %c0_i32 = arith.constant 0 : i32
    %c0_i32_0 = arith.constant 0 : i32
    %c0_i32_1 = arith.constant 0 : i32
    return %c0_i32, %c0_i32_0 : i32, i32
  }
  func.func @transform_13(%arg0: i32) -> (i32, i32) {
    %c0_i32 = arith.constant 0 : i32
    %c0_i32_0 = arith.constant 0 : i32
    return %arg0, %c0_i32 : i32, i32
  }
}

</mosaic_0001>

<llo_original>
// kernel: dqn_forward.4
$region0: #{dqn_forward.4}
  #allocation0 [shape = 'u32[]', space=smem, size = 0x4, offset = 0x4, fixed_abs, tag = 'smem constant byte address 0x4 - core index']
  #allocation1 [shape = 'u32[144,128]{1,0:T(1,128)}', space=vmem, size = 0x12000, scoped, tag = 'internal scratch']
  %s0 = inlined_call_operand.vmem [shape: bf16[128,256], index: 0, kind: input, shape index: {}]
  %s1 = inlined_call_operand.vmem [shape: bf16[256,32], index: 1, kind: input, shape index: {}]
  %s2 = inlined_call_operand.vmem [shape: f32[1,32], index: 2, kind: input, shape index: {}]
  %s3 = inlined_call_operand.vmem [shape: bf16[128,32], index: 3, kind: output, shape index: {}]
  %s4 = sld [smem:[#allocation0]]
  $region22: #{dqn_forward.4} parent=0
    _
  %s6 = ssub.s32 1, %s4
  %s7 = scalar_select 0, %s6, %s4
  // Predicated region
  $region2: #{dqn_forward.4} parent=0 // pred_check
    _
  $region3: #{dqn_forward.4} parent=0 // pred_check_branch
    %9 = sbr.rel (0) target = $region5
  $region4: #{dqn_forward.4} parent=0 // pred_region
    _
  $region5: #{dqn_forward.4} parent=0 // pred_fallthru
    _
  // Predicated region
  $region6: #{dqn_forward.4} parent=0 // pred_check
    _
  $region7: #{dqn_forward.4} parent=0 // pred_check_branch
    %11 = sbr.rel (0) target = $region9
  $region8: #{dqn_forward.4} parent=0 // pred_region
    _
  $region9: #{dqn_forward.4} parent=0 // pred_fallthru
    _
  // Predicated region
  $region10: #{dqn_forward.4} parent=0 // pred_check
    _
  $region11: #{dqn_forward.4} parent=0 // pred_check_branch
    %13 = sbr.rel (0) target = $region13
  $region12: #{dqn_forward.4} parent=0 // pred_region
    _
  $region13: #{dqn_forward.4} parent=0 // pred_fallthru
    _
  %v15 = vld [vmem:[%s0] sm:$0xff]
  %v16 = vld [vmem:[%s0 + $0x8] sm:$0xff]
  %v17 = vld [vmem:[%s0 + $0x10] sm:$0xff]
  %v18 = vld [vmem:[%s0 + $0x18] sm:$0xff]
  %v19 = vld [vmem:[%s0 + $0x20] sm:$0xff]
  %v20 = vld [vmem:[%s0 + $0x28] sm:$0xff]
  %v21 = vld [vmem:[%s0 + $0x30] sm:$0xff]
  %v22 = vld [vmem:[%s0 + $0x38] sm:$0xff]
  %v23 = vld [vmem:[%s0 + $0x40] sm:$0xff]
  %v24 = vld [vmem:[%s0 + $0x48] sm:$0xff]
  %v25 = vld [vmem:[%s0 + $0x50] sm:$0xff]
  %v26 = vld [vmem:[%s0 + $0x58] sm:$0xff]
  %v27 = vld [vmem:[%s0 + $0x60] sm:$0xff]
  %v28 = vld [vmem:[%s0 + $0x68] sm:$0xff]
  %v29 = vld [vmem:[%s0 + $0x70] sm:$0xff]
  %v30 = vld [vmem:[%s0 + $0x78] sm:$0xff]
  %v31 = vld [vmem:[%s1] sm:$0xf]
  %v32 = vld [vmem:[%s1 + $0x4] sm:$0xf]
  %v33 = vld [vmem:[%s1 + $0x8] sm:$0xf]
  %v34 = vld [vmem:[%s1 + $0xc] sm:$0xf]
  %v35 = vld [vmem:[%s1 + $0x10] sm:$0xf]
  %v36 = vld [vmem:[%s1 + $0x14] sm:$0xf]
  %v37 = vld [vmem:[%s1 + $0x18] sm:$0xf]
  %v38 = vld [vmem:[%s1 + $0x1c] sm:$0xf]
  %v39 = vld [vmem:[%s1 + $0x20] sm:$0xf]
  %v40 = vld [vmem:[%s1 + $0x24] sm:$0xf]
  %v41 = vld [vmem:[%s1 + $0x28] sm:$0xf]
  %v42 = vld [vmem:[%s1 + $0x2c] sm:$0xf]
  %v43 = vld [vmem:[%s1 + $0x30] sm:$0xf]
  %v44 = vld [vmem:[%s1 + $0x34] sm:$0xf]
  %v45 = vld [vmem:[%s1 + $0x38] sm:$0xf]
  %v46 = vld [vmem:[%s1 + $0x3c] sm:$0xf]
  %v47 = vld [vmem:[%s1 + $0x40] sm:$0xf]
  %v48 = vld [vmem:[%s1 + $0x44] sm:$0xf]
  %v49 = vld [vmem:[%s1 + $0x48] sm:$0xf]
  %v50 = vld [vmem:[%s1 + $0x4c] sm:$0xf]
  %v51 = vld [vmem:[%s1 + $0x50] sm:$0xf]
  %v52 = vld [vmem:[%s1 + $0x54] sm:$0xf]
  %v53 = vld [vmem:[%s1 + $0x58] sm:$0xf]
  %v54 = vld [vmem:[%s1 + $0x5c] sm:$0xf]
  %v55 = vld [vmem:[%s1 + $0x60] sm:$0xf]
  %v56 = vld [vmem:[%s1 + $0x64] sm:$0xf]
  %v57 = vld [vmem:[%s1 + $0x68] sm:$0xf]
  %v58 = vld [vmem:[%s1 + $0x6c] sm:$0xf]
  %v59 = vld [vmem:[%s1 + $0x70] sm:$0xf]
  %v60 = vld [vmem:[%s1 + $0x74] sm:$0xf]
  %v61 = vld [vmem:[%s1 + $0x78] sm:$0xf]
  %v62 = vld [vmem:[%s1 + $0x7c] sm:$0xf]
  %v63 = vld [vmem:[%s2] sm:$0x1]
  %v65 = vlaneseq
  %v66 = vshrl.u32 %v65, 7
  %v67 = vsub.s32 0, %v66
  %v68 = vrot.slane %v63, %v67
  %v86 = vunpack.c.l.b16 %v15
  %v87 = vunpack.c.h.b16 %v15
  %v88 = vunpack.c.l.b16 %v16
  %v89 = vunpack.c.h.b16 %v16
  %v90 = vunpack.c.l.b16 %v17
  %v91 = vunpack.c.h.b16 %v17
  %v92 = vunpack.c.l.b16 %v18
  %v93 = vunpack.c.h.b16 %v18
  %v94 = vunpack.c.l.b16 %v19
  %v95 = vunpack.c.h.b16 %v19
  %v96 = vunpack.c.l.b16 %v20
  %v97 = vunpack.c.h.b16 %v20
  %v98 = vunpack.c.l.b16 %v21
  %v99 = vunpack.c.h.b16 %v21
  %v100 = vunpack.c.l.b16 %v22
  %v101 = vunpack.c.h.b16 %v22
  %v102 = vunpack.c.l.b16 %v23
  %v103 = vunpack.c.h.b16 %v23
  %v104 = vunpack.c.l.b16 %v24
  %v105 = vunpack.c.h.b16 %v24
  %v106 = vunpack.c.l.b16 %v25
  %v107 = vunpack.c.h.b16 %v25
  %v108 = vunpack.c.l.b16 %v26
  %v109 = vunpack.c.h.b16 %v26
  %v110 = vunpack.c.l.b16 %v27
  %v111 = vunpack.c.h.b16 %v27
  %v112 = vunpack.c.l.b16 %v28
  %v113 = vunpack.c.h.b16 %v28
  %v114 = vunpack.c.l.b16 %v29
  %v115 = vunpack.c.h.b16 %v29
  %v116 = vunpack.c.l.b16 %v30
  %v117 = vunpack.c.h.b16 %v30
  %v118 = vpack.c.b16 %v88, %v86
  %v119 = vpack.c.b16 %v89, %v87
  %v120 = vpack.c.b16 %v92, %v90
  %v121 = vpack.c.b16 %v93, %v91
  %v122 = vpack.c.b16 %v96, %v94
  %v123 = vpack.c.b16 %v97, %v95
  %v124 = vpack.c.b16 %v100, %v98
  %v125 = vpack.c.b16 %v101, %v99
  %v126 = vpack.c.b16 %v104, %v102
  %v127 = vpack.c.b16 %v105, %v103
  %v128 = vpack.c.b16 %v108, %v106
  %v129 = vpack.c.b16 %v109, %v107
  %v130 = vpack.c.b16 %v112, %v110
  %v131 = vpack.c.b16 %v113, %v111
  %v132 = vpack.c.b16 %v116, %v114
  %v133 = vpack.c.b16 %v117, %v115
  %v182 = vunpack.c.l.b16 %v31
  %v183 = vunpack.c.l.b16 %v32
  %v184 = vunpack.c.l.b16 %v33
  %v185 = vunpack.c.l.b16 %v34
  %v186 = vunpack.c.l.b16 %v35
  %v187 = vunpack.c.l.b16 %v36
  %v188 = vunpack.c.l.b16 %v37
  %v189 = vunpack.c.l.b16 %v38
  %v190 = vunpack.c.l.b16 %v39
  %v191 = vunpack.c.l.b16 %v40
  %v192 = vunpack.c.l.b16 %v41
  %v193 = vunpack.c.l.b16 %v42
  %v194 = vunpack.c.l.b16 %v43
  %v195 = vunpack.c.l.b16 %v44
  %v196 = vunpack.c.l.b16 %v45
  %v197 = vunpack.c.l.b16 %v46
  %v198 = vunpack.c.l.b16 %v47
  %v199 = vunpack.c.l.b16 %v48
  %v200 = vunpack.c.l.b16 %v49
  %v201 = vunpack.c.l.b16 %v50
  %v202 = vunpack.c.l.b16 %v51
  %v203 = vunpack.c.l.b16 %v52
  %v204 = vunpack.c.l.b16 %v53
  %v205 = vunpack.c.l.b16 %v54
  %v206 = vunpack.c.l.b16 %v55
  %v207 = vunpack.c.l.b16 %v56
  %v208 = vunpack.c.l.b16 %v57
  %v209 = vunpack.c.l.b16 %v58
  %v210 = vunpack.c.l.b16 %v59
  %v211 = vunpack.c.l.b16 %v60
  %v212 = vunpack.c.l.b16 %v61
  %v213 = vunpack.c.l.b16 %v62
  %v214 = vpack.c.b16 %v183, %v182
  %v215 = vpack.c.b16 %v185, %v184
  %v216 = vpack.c.b16 %v187, %v186
  %v217 = vpack.c.b16 %v189, %v188
  %v218 = vpack.c.b16 %v191, %v190
  %v219 = vpack.c.b16 %v193, %v192
  %v220 = vpack.c.b16 %v195, %v194
  %v221 = vpack.c.b16 %v197, %v196
  %v222 = vpack.c.b16 %v199, %v198
  %v223 = vpack.c.b16 %v201, %v200
  %v224 = vpack.c.b16 %v203, %v202
  %v225 = vpack.c.b16 %v205, %v204
  %v226 = vpack.c.b16 %v207, %v206
  %v227 = vpack.c.b16 %v209, %v208
  %v228 = vpack.c.b16 %v211, %v210
  %v229 = vpack.c.b16 %v213, %v212
  %246 = vmatprep.subr.bf16.mxu0 0
  %247 = vmatpush1.bf16.msra.mxu0 %v214
  %248 = vmatprep.subr.bf16.mxu0 0
  %249 = vmatpush1.bf16.msra.mxu0 %v215
  %250 = vmatprep.subr.bf16.mxu0 0
  %251 = vmatpush1.bf16.msra.mxu0 %v216
  %252 = vmatprep.subr.bf16.mxu0 0
  %253 = vmatpush1.bf16.msra.mxu0 %v217
  %254 = vmatprep.subr.bf16.mxu0 0
  %255 = vmatpush1.bf16.msra.mxu0 %v218
  %256 = vmatprep.subr.bf16.mxu0 0
  %257 = vmatpush1.bf16.msra.mxu0 %v219
  %258 = vmatprep.subr.bf16.mxu0 0
  %259 = vmatpush1.bf16.msra.mxu0 %v220
  %260 = vmatprep.subr.bf16.mxu0 0
  %261 = vmatpush1.bf16.msra.mxu0 %v221
  %262 = vmatprep.subr.bf16.mxu0 0
  %263 = vmatpush1.bf16.msra.mxu0 %v222
  %264 = vmatprep.subr.bf16.mxu0 0
  %265 = vmatpush1.bf16.msra.mxu0 %v223
  %266 = vmatprep.subr.bf16.mxu0 0
  %267 = vmatpush1.bf16.msra.mxu0 %v224
  %268 = vmatprep.subr.bf16.mxu0 0
  %269 = vmatpush1.bf16.msra.mxu0 %v225
  %270 = vmatprep.subr.bf16.mxu0 0
  %271 = vmatpush1.bf16.msra.mxu0 %v226
  %272 = vmatprep.subr.bf16.mxu0 0
  %273 = vmatpush1.bf16.msra.mxu0 %v227
  %274 = vmatprep.subr.bf16.mxu0 0
  %275 = vmatpush1.bf16.msra.mxu0 %v228
  %276 = vmatprep.subr.bf16.mxu0 0
  %277 = vmatpush1.bf16.msra.mxu0 %v229
  %278 = vmatprep.mubr.bf16.mxu0 %v119
  %279 = vmatmul.mubr.bf16.gmra.mrb[0].mxu0 %v118
  %v280 = vpop.f32.mrb[0].mxu0
  %v281 = vadd.f32 %v68, %v280
  %v282 = vpop.f32.mrb[0].mxu0
  %v283 = vpop.f32.mrb[0].mxu0
  %v284 = vadd.f32 %v68, %v283
  %v285 = vpop.f32.mrb[0].mxu0
  %286 = vmatprep.mubr.bf16.mxu0 %v121
  %287 = vmatmul.mubr.bf16.gmra.mrb[0].mxu0 %v120
  %v288 = vpop.f32.mrb[0].mxu0
  %v289 = vadd.f32 %v68, %v288
  %v290 = vpop.f32.mrb[0].mxu0
  %v291 = vpop.f32.mrb[0].mxu0
  %v292 = vadd.f32 %v68, %v291
  %v293 = vpop.f32.mrb[0].mxu0
  %294 = vmatprep.mubr.bf16.mxu0 %v123
  %295 = vmatmul.mubr.bf16.gmra.mrb[0].mxu0 %v122
  %v296 = vpop.f32.mrb[0].mxu0
  %v297 = vadd.f32 %v68, %v296
  %v298 = vpop.f32.mrb[0].mxu0
  %v299 = vpop.f32.mrb[0].mxu0
  %v300 = vadd.f32 %v68, %v299
  %v301 = vpop.f32.mrb[0].mxu0
  %302 = vmatprep.mubr.bf16.mxu0 %v125
  %303 = vmatmul.mubr.bf16.gmra.mrb[0].mxu0 %v124
  %v304 = vpop.f32.mrb[0].mxu0
  %v305 = vadd.f32 %v68, %v304
  %v306 = vpop.f32.mrb[0].mxu0
  %v307 = vpop.f32.mrb[0].mxu0
  %v308 = vadd.f32 %v68, %v307
  %v309 = vpop.f32.mrb[0].mxu0
  %310 = vmatprep.mubr.bf16.mxu0 %v127
  %311 = vmatmul.mubr.bf16.gmra.mrb[0].mxu0 %v126
  %v312 = vpop.f32.mrb[0].mxu0
  %v313 = vadd.f32 %v68, %v312
  %v314 = vpop.f32.mrb[0].mxu0
  %v315 = vpop.f32.mrb[0].mxu0
  %v316 = vadd.f32 %v68, %v315
  %v317 = vpop.f32.mrb[0].mxu0
  %318 = vmatprep.mubr.bf16.mxu0 %v129
  %319 = vmatmul.mubr.bf16.gmra.mrb[0].mxu0 %v128
  %v320 = vpop.f32.mrb[0].mxu0
  %v321 = vadd.f32 %v68, %v320
  %v322 = vpop.f32.mrb[0].mxu0
  %v323 = vpop.f32.mrb[0].mxu0
  %v324 = vadd.f32 %v68, %v323
  %v325 = vpop.f32.mrb[0].mxu0
  %326 = vmatprep.mubr.bf16.mxu0 %v131
  %327 = vmatmul.mubr.bf16.gmra.mrb[0].mxu0 %v130
  %v328 = vpop.f32.mrb[0].mxu0
  %v329 = vadd.f32 %v68, %v328
  %v330 = vpop.f32.mrb[0].mxu0
  %v331 = vpop.f32.mrb[0].mxu0
  %v332 = vadd.f32 %v68, %v331
  %v333 = vpop.f32.mrb[0].mxu0
  %334 = vmatprep.mubr.bf16.mxu0 %v133
  %335 = vmatmul.mubr.bf16.gmra.mrb[0].mxu0 %v132
  %v336 = vpop.f32.mrb[0].mxu0
  %v337 = vadd.f32 %v68, %v336
  %v338 = vpop.f32.mrb[0].mxu0
  %v339 = vpop.f32.mrb[0].mxu0
  %v340 = vadd.f32 %v68, %v339
  %v341 = vpop.f32.mrb[0].mxu0
  %342 = vdwg.mxu0
  %v343 = vmax.f32 %v281, 0.0
  %v344 = vmax.f32 %v284, 0.0
  %v345 = vmax.f32 %v289, 0.0
  %v346 = vmax.f32 %v292, 0.0
  %v347 = vmax.f32 %v297, 0.0
  %v348 = vmax.f32 %v300, 0.0
  %v349 = vmax.f32 %v305, 0.0
  %v350 = vmax.f32 %v308, 0.0
  %v351 = vmax.f32 %v313, 0.0
  %v352 = vmax.f32 %v316, 0.0
  %v353 = vmax.f32 %v321, 0.0
  %v354 = vmax.f32 %v324, 0.0
  %v355 = vmax.f32 %v329, 0.0
  %v356 = vmax.f32 %v332, 0.0
  %v357 = vmax.f32 %v337, 0.0
  %v358 = vmax.f32 %v340, 0.0
  %v359 = vpack.c.bf16 %v344, %v343
  %v360 = vpack.c.bf16 %v346, %v345
  %v361 = vpack.c.bf16 %v348, %v347
  %v362 = vpack.c.bf16 %v350, %v349
  %v363 = vpack.c.bf16 %v352, %v351
  %v364 = vpack.c.bf16 %v354, %v353
  %v365 = vpack.c.bf16 %v356, %v355
  %v366 = vpack.c.bf16 %v358, %v357
  %v375 = vunpack.c.l.b16 %v359
  %v376 = vunpack.c.h.b16 %v359
  %v377 = vunpack.c.l.b16 %v360
  %v378 = vunpack.c.h.b16 %v360
  %v379 = vunpack.c.l.b16 %v361
  %v380 = vunpack.c.h.b16 %v361
  %v381 = vunpack.c.l.b16 %v362
  %v382 = vunpack.c.h.b16 %v362
  %v383 = vunpack.c.l.b16 %v363
  %v384 = vunpack.c.h.b16 %v363
  %v385 = vunpack.c.l.b16 %v364
  %v386 = vunpack.c.h.b16 %v364
  %v387 = vunpack.c.l.b16 %v365
  %v388 = vunpack.c.h.b16 %v365
  %v389 = vunpack.c.l.b16 %v366
  %v390 = vunpack.c.h.b16 %v366
  %v391 = vpack.c.b16 %v375, %v375
  %v392 = vpack.c.b16 %v376, %v376
  %v393 = vpack.c.b16 %v377, %v377
  %v394 = vpack.c.b16 %v378, %v378
  %v395 = vpack.c.b16 %v379, %v379
  %v396 = vpack.c.b16 %v380, %v380
  %v397 = vpack.c.b16 %v381, %v381
  %v398 = vpack.c.b16 %v382, %v382
  %v399 = vpack.c.b16 %v383, %v383
  %v400 = vpack.c.b16 %v384, %v384
  %v401 = vpack.c.b16 %v385, %v385
  %v402 = vpack.c.b16 %v386, %v386
  %v403 = vpack.c.b16 %v387, %v387
  %v404 = vpack.c.b16 %v388, %v388
  %v405 = vpack.c.b16 %v389, %v389
  %v406 = vpack.c.b16 %v390, %v390
  %vm423 = vcmask 257024
  %424 = vst.msk [vmem:[%s3] sm:$0xf] %vm423, %v391
  %425 = vst.msk [vmem:[%s3 + $0x4] sm:$0xf] %vm423, %v392
  %426 = vst.msk [vmem:[%s3 + $0x8] sm:$0xf] %vm423, %v393
  %427 = vst.msk [vmem:[%s3 + $0xc] sm:$0xf] %vm423, %v394
  %428 = vst.msk [vmem:[%s3 + $0x10] sm:$0xf] %vm423, %v395
  %429 = vst.msk [vmem:[%s3 + $0x14] sm:$0xf] %vm423, %v396
  %430 = vst.msk [vmem:[%s3 + $0x18] sm:$0xf] %vm423, %v397
  %431 = vst.msk [vmem:[%s3 + $0x1c] sm:$0xf] %vm423, %v398
  %432 = vst.msk [vmem:[%s3 + $0x20] sm:$0xf] %vm423, %v399
  %433 = vst.msk [vmem:[%s3 + $0x24] sm:$0xf] %vm423, %v400
  %434 = vst.msk [vmem:[%s3 + $0x28] sm:$0xf] %vm423, %v401
  %435 = vst.msk [vmem:[%s3 + $0x2c] sm:$0xf] %vm423, %v402
  %436 = vst.msk [vmem:[%s3 + $0x30] sm:$0xf] %vm423, %v403
  %437 = vst.msk [vmem:[%s3 + $0x34] sm:$0xf] %vm423, %v404
  %438 = vst.msk [vmem:[%s3 + $0x38] sm:$0xf] %vm423, %v405
  %439 = vst.msk [vmem:[%s3 + $0x3c] sm:$0xf] %vm423, %v406
  // Predicated region
  $region14: #{dqn_forward.4} parent=0 // pred_check
    _
  $region15: #{dqn_forward.4} parent=0 // pred_check_branch
    %441 = sbr.rel (0) target = $region17
  $region16: #{dqn_forward.4} parent=0 // pred_region
    _
  $region17: #{dqn_forward.4} parent=0 // pred_fallthru
    _
  // Predicated region
  $region18: #{dqn_forward.4} parent=0 // pred_check
    _
  $region19: #{dqn_forward.4} parent=0 // pred_check_branch
    %443 = sbr.rel (0) target = $region21
  $region20: #{dqn_forward.4} parent=0 // pred_region
    _
  $region21: #{dqn_forward.4} parent=0 // pred_fallthru
    _

// kernel: dqn_forward.5
$region0: #{dqn_forward.5}
  #allocation0 [shape = 'u32[]', space=smem, size = 0x4, offset = 0x4, fixed_abs, tag = 'smem constant byte address 0x4 - core index']
  #allocation1 [shape = 'u32[144,128]{1,0:T(1,128)}', space=vmem, size = 0x12000, scoped, tag = 'internal scratch']
  %s0 = inlined_call_operand.vmem [shape: bf16[18,512], index: 0, kind: input, shape index: {}]
  %s1 = inlined_call_operand.vmem [shape: bf16[512,64], index: 1, kind: input, shape index: {}]
  %s2 = inlined_call_operand.vmem [shape: f32[1,64], index: 2, kind: input, shape index: {}]
  %s3 = inlined_call_operand.vmem [shape: bf16[18,64], index: 3, kind: output, shape index: {}]
  %s4 = sld [smem:[#allocation0]]
  $region22: #{dqn_forward.5} parent=0
    _
  %s6 = ssub.s32 1, %s4
  %s7 = scalar_select 0, %s6, %s4
  // Predicated region
  $region2: #{dqn_forward.5} parent=0 // pred_check
    _
  $region3: #{dqn_forward.5} parent=0 // pred_check_branch
    %9 = sbr.rel (0) target = $region5
  $region4: #{dqn_forward.5} parent=0 // pred_region
    _
  $region5: #{dqn_forward.5} parent=0 // pred_fallthru
    _
  // Predicated region
  $region6: #{dqn_forward.5} parent=0 // pred_check
    _
  $region7: #{dqn_forward.5} parent=0 // pred_check_branch
    %11 = sbr.rel (0) target = $region9
  $region8: #{dqn_forward.5} parent=0 // pred_region
    _
  $region9: #{dqn_forward.5} parent=0 // pred_fallthru
    _
  // Predicated region
  $region10: #{dqn_forward.5} parent=0 // pred_check
    _
  $region11: #{dqn_forward.5} parent=0 // pred_check_branch
    %13 = sbr.rel (0) target = $region13
  $region12: #{dqn_forward.5} parent=0 // pred_region
    _
  $region13: #{dqn_forward.5} parent=0 // pred_fallthru
    _
  %v15 = vld [vmem:[%s0] sm:$0xff]
  %v16 = vld [vmem:[%s0 + $0x8] sm:$0xff]
  %v17 = vld [vmem:[%s0 + $0x10] sm:$0xff]
  %v18 = vld [vmem:[%s0 + $0x18] sm:$0xff]
  %v19 = vld [vmem:[%s0 + $0x20] sm:$0x11]
  %v20 = vld [vmem:[%s0 + $0x28] sm:$0x11]
  %v21 = vld [vmem:[%s1] sm:$0xf]
  %v22 = vld [vmem:[%s1 + $0x4] sm:$0xf]
  %v23 = vld [vmem:[%s1 + $0x8] sm:$0xf]
  %v24 = vld [vmem:[%s1 + $0xc] sm:$0xf]
  %v25 = vld [vmem:[%s1 + $0x10] sm:$0xf]
  %v26 = vld [vmem:[%s1 + $0x14] sm:$0xf]
  %v27 = vld [vmem:[%s1 + $0x18] sm:$0xf]
  %v28 = vld [vmem:[%s1 + $0x1c] sm:$0xf]
  %v29 = vld [vmem:[%s1 + $0x20] sm:$0xf]
  %v30 = vld [vmem:[%s1 + $0x24] sm:$0xf]
  %v31 = vld [vmem:[%s1 + $0x28] sm:$0xf]
  %v32 = vld [vmem:[%s1 + $0x2c] sm:$0xf]
  %v33 = vld [vmem:[%s1 + $0x30] sm:$0xf]
  %v34 = vld [vmem:[%s1 + $0x34] sm:$0xf]
  %v35 = vld [vmem:[%s1 + $0x38] sm:$0xf]
  %v36 = vld [vmem:[%s1 + $0x3c] sm:$0xf]
  %v37 = vld [vmem:[%s1 + $0x40] sm:$0xf]
  %v38 = vld [vmem:[%s1 + $0x44] sm:$0xf]
  %v39 = vld [vmem:[%s1 + $0x48] sm:$0xf]
  %v40 = vld [vmem:[%s1 + $0x4c] sm:$0xf]
  %v41 = vld [vmem:[%s1 + $0x50] sm:$0xf]
  %v42 = vld [vmem:[%s1 + $0x54] sm:$0xf]
  %v43 = vld [vmem:[%s1 + $0x58] sm:$0xf]
  %v44 = vld [vmem:[%s1 + $0x5c] sm:$0xf]
  %v45 = vld [vmem:[%s1 + $0x60] sm:$0xf]
  %v46 = vld [vmem:[%s1 + $0x64] sm:$0xf]
  %v47 = vld [vmem:[%s1 + $0x68] sm:$0xf]
  %v48 = vld [vmem:[%s1 + $0x6c] sm:$0xf]
  %v49 = vld [vmem:[%s1 + $0x70] sm:$0xf]
  %v50 = vld [vmem:[%s1 + $0x74] sm:$0xf]
  %v51 = vld [vmem:[%s1 + $0x78] sm:$0xf]
  %v52 = vld [vmem:[%s1 + $0x7c] sm:$0xf]
  %v53 = vld [vmem:[%s1 + $0x80] sm:$0xf]
  %v54 = vld [vmem:[%s1 + $0x84] sm:$0xf]
  %v55 = vld [vmem:[%s1 + $0x88] sm:$0xf]
  %v56 = vld [vmem:[%s1 + $0x8c] sm:$0xf]
  %v57 = vld [vmem:[%s1 + $0x90] sm:$0xf]
  %v58 = vld [vmem:[%s1 + $0x94] sm:$0xf]
  %v59 = vld [vmem:[%s1 + $0x98] sm:$0xf]
  %v60 = vld [vmem:[%s1 + $0x9c] sm:$0xf]
  %v61 = vld [vmem:[%s1 + $0xa0] sm:$0xf]
  %v62 = vld [vmem:[%s1 + $0xa4] sm:$0xf]
  %v63 = vld [vmem:[%s1 + $0xa8] sm:$0xf]
  %v64 = vld [vmem:[%s1 + $0xac] sm:$0xf]
  %v65 = vld [vmem:[%s1 + $0xb0] sm:$0xf]
  %v66 = vld [vmem:[%s1 + $0xb4] sm:$0xf]
  %v67 = vld [vmem:[%s1 + $0xb8] sm:$0xf]
  %v68 = vld [vmem:[%s1 + $0xbc] sm:$0xf]
  %v69 = vld [vmem:[%s1 + $0xc0] sm:$0xf]
  %v70 = vld [vmem:[%s1 + $0xc4] sm:$0xf]
  %v71 = vld [vmem:[%s1 + $0xc8] sm:$0xf]
  %v72 = vld [vmem:[%s1 + $0xcc] sm:$0xf]
  %v73 = vld [vmem:[%s1 + $0xd0] sm:$0xf]
  %v74 = vld [vmem:[%s1 + $0xd4] sm:$0xf]
  %v75 = vld [vmem:[%s1 + $0xd8] sm:$0xf]
  %v76 = vld [vmem:[%s1 + $0xdc] sm:$0xf]
  %v77 = vld [vmem:[%s1 + $0xe0] sm:$0xf]
  %v78 = vld [vmem:[%s1 + $0xe4] sm:$0xf]
  %v79 = vld [vmem:[%s1 + $0xe8] sm:$0xf]
  %v80 = vld [vmem:[%s1 + $0xec] sm:$0xf]
  %v81 = vld [vmem:[%s1 + $0xf0] sm:$0xf]
  %v82 = vld [vmem:[%s1 + $0xf4] sm:$0xf]
  %v83 = vld [vmem:[%s1 + $0xf8] sm:$0xf]
  %v84 = vld [vmem:[%s1 + $0xfc] sm:$0xf]
  %v85 = vld [vmem:[%s2] sm:$0x1]
  %v87 = vlaneseq
  %v88 = vshrl.u32 %v87, 7
  %v89 = vsub.s32 0, %v88
  %v90 = vrot.slane %v85, %v89
  %v98 = vunpack.c.l.b16 %v15
  %v99 = vunpack.c.h.b16 %v15
  %v100 = vunpack.c.l.b16 %v16
  %v101 = vunpack.c.h.b16 %v16
  %v102 = vunpack.c.l.b16 %v17
  %v103 = vunpack.c.h.b16 %v17
  %v104 = vunpack.c.l.b16 %v18
  %v105 = vunpack.c.h.b16 %v18
  %v106 = vunpack.c.l.b16 %v19
  %v107 = vunpack.c.h.b16 %v19
  %v108 = vunpack.c.l.b16 %v20
  %v109 = vunpack.c.h.b16 %v20
  %v110 = vpack.c.b16 %v102, %v98
  %v111 = vpack.c.b16 %v103, %v99
  %v112 = vpack.c.b16 %v104, %v100
  %v113 = vpack.c.b16 %v105, %v101
  %v114 = vpack.c.b16 %v106, %v106
  %v115 = vpack.c.b16 %v107, %v107
  %v116 = vpack.c.b16 %v108, %v108
  %v117 = vpack.c.b16 %v109, %v109
  %v190 = vunpack.c.l.b16 %v21
  %v191 = vunpack.c.l.b16 %v22
  %v192 = vunpack.c.l.b16 %v23
  %v193 = vunpack.c.l.b16 %v24
  %v194 = vunpack.c.l.b16 %v25
  %v195 = vunpack.c.l.b16 %v26
  %v196 = vunpack.c.l.b16 %v27
  %v197 = vunpack.c.l.b16 %v28
  %v198 = vunpack.c.l.b16 %v29
  %v199 = vunpack.c.l.b16 %v30
  %v200 = vunpack.c.l.b16 %v31
  %v201 = vunpack.c.l.b16 %v32
  %v202 = vunpack.c.l.b16 %v33
  %v203 = vunpack.c.l.b16 %v34
  %v204 = vunpack.c.l.b16 %v35
  %v205 = vunpack.c.l.b16 %v36
  %v206 = vunpack.c.l.b16 %v37
  %v207 = vunpack.c.l.b16 %v38
  %v208 = vunpack.c.l.b16 %v39
  %v209 = vunpack.c.l.b16 %v40
  %v210 = vunpack.c.l.b16 %v41
  %v211 = vunpack.c.l.b16 %v42
  %v212 = vunpack.c.l.b16 %v43
  %v213 = vunpack.c.l.b16 %v44
  %v214 = vunpack.c.l.b16 %v45
  %v215 = vunpack.c.l.b16 %v46
  %v216 = vunpack.c.l.b16 %v47
  %v217 = vunpack.c.l.b16 %v48
  %v218 = vunpack.c.l.b16 %v49
  %v219 = vunpack.c.l.b16 %v50
  %v220 = vunpack.c.l.b16 %v51
  %v221 = vunpack.c.l.b16 %v52
  %v222 = vunpack.c.l.b16 %v53
  %v223 = vunpack.c.l.b16 %v54
  %v224 = vunpack.c.l.b16 %v55
  %v225 = vunpack.c.l.b16 %v56
  %v226 = vunpack.c.l.b16 %v57
  %v227 = vunpack.c.l.b16 %v58
  %v228 = vunpack.c.l.b16 %v59
  %v229 = vunpack.c.l.b16 %v60
  %v230 = vunpack.c.l.b16 %v61
  %v231 = vunpack.c.l.b16 %v62
  %v232 = vunpack.c.l.b16 %v63
  %v233 = vunpack.c.l.b16 %v64
  %v234 = vunpack.c.l.b16 %v65
  %v235 = vunpack.c.l.b16 %v66
  %v236 = vunpack.c.l.b16 %v67
  %v237 = vunpack.c.l.b16 %v68
  %v238 = vunpack.c.l.b16 %v69
  %v239 = vunpack.c.l.b16 %v70
  %v240 = vunpack.c.l.b16 %v71
  %v241 = vunpack.c.l.b16 %v72
  %v242 = vunpack.c.l.b16 %v73
  %v243 = vunpack.c.l.b16 %v74
  %v244 = vunpack.c.l.b16 %v75
  %v245 = vunpack.c.l.b16 %v76
  %v246 = vunpack.c.l.b16 %v77
  %v247 = vunpack.c.l.b16 %v78
  %v248 = vunpack.c.l.b16 %v79
  %v249 = vunpack.c.l.b16 %v80
  %v250 = vunpack.c.l.b16 %v81
  %v251 = vunpack.c.l.b16 %v82
  %v252 = vunpack.c.l.b16 %v83
  %v253 = vunpack.c.l.b16 %v84
  %v254 = vpack.c.b16 %v191, %v190
  %v255 = vpack.c.b16 %v193, %v192
  %v256 = vpack.c.b16 %v195, %v194
  %v257 = vpack.c.b16 %v197, %v196
  %v258 = vpack.c.b16 %v199, %v198
  %v259 = vpack.c.b16 %v201, %v200
  %v260 = vpack.c.b16 %v203, %v202
  %v261 = vpack.c.b16 %v205, %v204
  %v262 = vpack.c.b16 %v207, %v206
  %v263 = vpack.c.b16 %v209, %v208
  %v264 = vpack.c.b16 %v211, %v210
  %v265 = vpack.c.b16 %v213, %v212
  %v266 = vpack.c.b16 %v215, %v214
  %v267 = vpack.c.b16 %v217, %v216
  %v268 = vpack.c.b16 %v219, %v218
  %v269 = vpack.c.b16 %v221, %v220
  %v270 = vpack.c.b16 %v223, %v222
  %v271 = vpack.c.b16 %v225, %v224
  %v272 = vpack.c.b16 %v227, %v226
  %v273 = vpack.c.b16 %v229, %v228
  %v274 = vpack.c.b16 %v231, %v230
  %v275 = vpack.c.b16 %v233, %v232
  %v276 = vpack.c.b16 %v235, %v234
  %v277 = vpack.c.b16 %v237, %v236
  %v278 = vpack.c.b16 %v239, %v238
  %v279 = vpack.c.b16 %v241, %v240
  %v280 = vpack.c.b16 %v243, %v242
  %v281 = vpack.c.b16 %v245, %v244
  %v282 = vpack.c.b16 %v247, %v246
  %v283 = vpack.c.b16 %v249, %v248
  %v284 = vpack.c.b16 %v251, %v250
  %v285 = vpack.c.b16 %v253, %v252
  %318 = vmatprep.subr.bf16.mxu0 0
  %319 = vmatpush1.bf16.msra.mxu0 %v254
  %320 = vmatprep.subr.bf16.mxu0 0
  %321 = vmatpush1.bf16.msra.mxu0 %v255
  %322 = vmatprep.subr.bf16.mxu0 0
  %323 = vmatpush1.bf16.msra.mxu0 %v256
  %324 = vmatprep.subr.bf16.mxu0 0
  %325 = vmatpush1.bf16.msra.mxu0 %v257
  %326 = vmatprep.subr.bf16.mxu0 0
  %327 = vmatpush1.bf16.msra.mxu0 %v258
  %328 = vmatprep.subr.bf16.mxu0 0
  %329 = vmatpush1.bf16.msra.mxu0 %v259
  %330 = vmatprep.subr.bf16.mxu0 0
  %331 = vmatpush1.bf16.msra.mxu0 %v260
  %332 = vmatprep.subr.bf16.mxu0 0
  %333 = vmatpush1.bf16.msra.mxu0 %v261
  %334 = vmatprep.subr.bf16.mxu0 0
  %335 = vmatpush1.bf16.msra.mxu0 %v262
  %336 = vmatprep.subr.bf16.mxu0 0
  %337 = vmatpush1.bf16.msra.mxu0 %v263
  %338 = vmatprep.subr.bf16.mxu0 0
  %339 = vmatpush1.bf16.msra.mxu0 %v264
  %340 = vmatprep.subr.bf16.mxu0 0
  %341 = vmatpush1.bf16.msra.mxu0 %v265
  %342 = vmatprep.subr.bf16.mxu0 0
  %343 = vmatpush1.bf16.msra.mxu0 %v266
  %344 = vmatprep.subr.bf16.mxu0 0
  %345 = vmatpush1.bf16.msra.mxu0 %v267
  %346 = vmatprep.subr.bf16.mxu0 0
  %347 = vmatpush1.bf16.msra.mxu0 %v268
  %348 = vmatprep.subr.bf16.mxu0 0
  %349 = vmatpush1.bf16.msra.mxu0 %v269
  %350 = vmatprep.mubr.bf16.mxu0 %v111
  %351 = vmatmul.mubr.bf16.gmra.mrb[0].mxu0 %v110
  %v352 = vpop.f32.mrb[0].mxu0
  %v353 = vadd.f32 %v90, %v352
  %v354 = vpop.f32.mrb[0].mxu0
  %v355 = vpop.f32.mrb[0].mxu0
  %v356 = vadd.f32 %v90, %v355
  %v357 = vpop.f32.mrb[0].mxu0
  %358 = vmatprep.mubr.bf16.mxu0 %v115
  %359 = vmatmul.mubr.bf16.gmra.mrb[0].mxu0 %v114
  %v360 = vpop.f32.mrb[0].mxu0
  %v361 = vadd.f32 %v90, %v360
  %v362 = vpop.f32.mrb[0].mxu0
  %v363 = vpop.f32.mrb[0].mxu0
  %v364 = vpop.f32.mrb[0].mxu0
  %365 = vdwg.mxu0
  %366 = vmatprep.subr.bf16.mxu0 0
  %367 = vmatpush1.bf16.msra.mxu0 %v270
  %368 = vmatprep.subr.bf16.mxu0 0
  %369 = vmatpush1.bf16.msra.mxu0 %v271
  %370 = vmatprep.subr.bf16.mxu0 0
  %371 = vmatpush1.bf16.msra.mxu0 %v272
  %372 = vmatprep.subr.bf16.mxu0 0
  %373 = vmatpush1.bf16.msra.mxu0 %v273
  %374 = vmatprep.subr.bf16.mxu0 0
  %375 = vmatpush1.bf16.msra.mxu0 %v274
  %376 = vmatprep.subr.bf16.mxu0 0
  %377 = vmatpush1.bf16.msra.mxu0 %v275
  %378 = vmatprep.subr.bf16.mxu0 0
  %379 = vmatpush1.bf16.msra.mxu0 %v276
  %380 = vmatprep.subr.bf16.mxu0 0
  %381 = vmatpush1.bf16.msra.mxu0 %v277
  %382 = vmatprep.subr.bf16.mxu0 0
  %383 = vmatpush1.bf16.msra.mxu0 %v278
  %384 = vmatprep.subr.bf16.mxu0 0
  %385 = vmatpush1.bf16.msra.mxu0 %v279
  %386 = vmatprep.subr.bf16.mxu0 0
  %387 = vmatpush1.bf16.msra.mxu0 %v280
  %388 = vmatprep.subr.bf16.mxu0 0
  %389 = vmatpush1.bf16.msra.mxu0 %v281
  %390 = vmatprep.subr.bf16.mxu0 0
  %391 = vmatpush1.bf16.msra.mxu0 %v282
  %392 = vmatprep.subr.bf16.mxu0 0
  %393 = vmatpush1.bf16.msra.mxu0 %v283
  %394 = vmatprep.subr.bf16.mxu0 0
  %395 = vmatpush1.bf16.msra.mxu0 %v284
  %396 = vmatprep.subr.bf16.mxu0 0
  %397 = vmatpush1.bf16.msra.mxu0 %v285
  %398 = vmatprep.mubr.bf16.mxu0 %v113
  %399 = vmatmul.mubr.bf16.gmra.mrb[0].mxu0 %v112
  %v400 = vpop.f32.mrb[0].mxu0
  %v401 = vadd.f32 %v353, %v400
  %v402 = vpop.f32.mrb[0].mxu0
  %v403 = vpop.f32.mrb[0].mxu0
  %v404 = vadd.f32 %v356, %v403
  %v405 = vpop.f32.mrb[0].mxu0
  %406 = vmatprep.mubr.bf16.mxu0 %v117
  %407 = vmatmul.mubr.bf16.gmra.mrb[0].mxu0 %v116
  %v408 = vpop.f32.mrb[0].mxu0
  %v409 = vadd.f32 %v361, %v408
  %v410 = vpop.f32.mrb[0].mxu0
  %v411 = vpop.f32.mrb[0].mxu0
  %v412 = vpop.f32.mrb[0].mxu0
  %413 = vdwg.mxu0
  %v414 = vmax.f32 %v401, 0.0
  %v415 = vmax.f32 %v404, 0.0
  %v416 = vmax.f32 %v409, 0.0
  %v417 = vpack.c.bf16 %v415, %v414
  %v418 = vpack.c.bf16 %v416, %v416
  %v421 = vunpack.c.l.b16 %v417
  %v422 = vunpack.c.h.b16 %v417
  %v423 = vunpack.c.l.b16 %v418
  %v424 = vpack.c.b16 %v421, %v421
  %v425 = vpack.c.b16 %v422, %v422
  %v426 = vpack.c.b16 %v423, %v423
  %vm430 = vcmask 519168
  %431 = vst.msk [vmem:[%s3] sm:$0xf] %vm430, %v424
  %432 = vst.msk [vmem:[%s3 + $0x4] sm:$0xf] %vm430, %v425
  %vm433 = vcmask 516096
  %434 = vst.msk [vmem:[%s3 + $0x8] sm:$0x1] %vm433, %v426
  // Predicated region
  $region14: #{dqn_forward.5} parent=0 // pred_check
    _
  $region15: #{dqn_forward.5} parent=0 // pred_check_branch
    %436 = sbr.rel (0) target = $region17
  $region16: #{dqn_forward.5} parent=0 // pred_region
    _
  $region17: #{dqn_forward.5} parent=0 // pred_fallthru
    _
  // Predicated region
  $region18: #{dqn_forward.5} parent=0 // pred_check
    _
  $region19: #{dqn_forward.5} parent=0 // pred_check_branch
    %438 = sbr.rel (0) target = $region21
  $region20: #{dqn_forward.5} parent=0 // pred_region
    _
  $region21: #{dqn_forward.5} parent=0 // pred_fallthru
    _

// kernel: dqn_forward.6
$region0: #{dqn_forward.6}
  #allocation0 [shape = 'u32[]', space=smem, size = 0x4, offset = 0x4, fixed_abs, tag = 'smem constant byte address 0x4 - core index']
  #allocation1 [shape = 'u32[144,128]{1,0:T(1,128)}', space=vmem, size = 0x12000, scoped, tag = 'internal scratch']
  %s0 = inlined_call_operand.vmem [shape: bf16[2,576], index: 0, kind: input, shape index: {}]
  %s1 = inlined_call_operand.vmem [shape: bf16[576,64], index: 1, kind: input, shape index: {}]
  %s2 = inlined_call_operand.vmem [shape: f32[1,64], index: 2, kind: input, shape index: {}]
  %s3 = inlined_call_operand.vmem [shape: bf16[2,64], index: 3, kind: output, shape index: {}]
  %s4 = sld [smem:[#allocation0]]
  $region22: #{dqn_forward.6} parent=0
    _
  %s6 = ssub.s32 1, %s4
  %s7 = scalar_select 0, %s6, %s4
  // Predicated region
  $region2: #{dqn_forward.6} parent=0 // pred_check
    _
  $region3: #{dqn_forward.6} parent=0 // pred_check_branch
    %9 = sbr.rel (0) target = $region5
  $region4: #{dqn_forward.6} parent=0 // pred_region
    _
  $region5: #{dqn_forward.6} parent=0 // pred_fallthru
    _
  // Predicated region
  $region6: #{dqn_forward.6} parent=0 // pred_check
    _
  $region7: #{dqn_forward.6} parent=0 // pred_check_branch
    %11 = sbr.rel (0) target = $region9
  $region8: #{dqn_forward.6} parent=0 // pred_region
    _
  $region9: #{dqn_forward.6} parent=0 // pred_fallthru
    _
  // Predicated region
  $region10: #{dqn_forward.6} parent=0 // pred_check
    _
  $region11: #{dqn_forward.6} parent=0 // pred_check_branch
    %13 = sbr.rel (0) target = $region13
  $region12: #{dqn_forward.6} parent=0 // pred_region
    _
  $region13: #{dqn_forward.6} parent=0 // pred_fallthru
    _
  %v15 = vld [vmem:[%s0] sm:$0x1f]
  %v16 = vld [vmem:[%s1] sm:$0xf]
  %v17 = vld [vmem:[%s1 + $0x4] sm:$0xf]
  %v18 = vld [vmem:[%s1 + $0x8] sm:$0xf]
  %v19 = vld [vmem:[%s1 + $0xc] sm:$0xf]
  %v20 = vld [vmem:[%s1 + $0x10] sm:$0xf]
  %v21 = vld [vmem:[%s1 + $0x14] sm:$0xf]
  %v22 = vld [vmem:[%s1 + $0x18] sm:$0xf]
  %v23 = vld [vmem:[%s1 + $0x1c] sm:$0xf]
  %v24 = vld [vmem:[%s1 + $0x20] sm:$0xf]
  %v25 = vld [vmem:[%s1 + $0x24] sm:$0xf]
  %v26 = vld [vmem:[%s1 + $0x28] sm:$0xf]
  %v27 = vld [vmem:[%s1 + $0x2c] sm:$0xf]
  %v28 = vld [vmem:[%s1 + $0x30] sm:$0xf]
  %v29 = vld [vmem:[%s1 + $0x34] sm:$0xf]
  %v30 = vld [vmem:[%s1 + $0x38] sm:$0xf]
  %v31 = vld [vmem:[%s1 + $0x3c] sm:$0xf]
  %v32 = vld [vmem:[%s1 + $0x40] sm:$0xf]
  %v33 = vld [vmem:[%s1 + $0x44] sm:$0xf]
  %v34 = vld [vmem:[%s1 + $0x48] sm:$0xf]
  %v35 = vld [vmem:[%s1 + $0x4c] sm:$0xf]
  %v36 = vld [vmem:[%s1 + $0x50] sm:$0xf]
  %v37 = vld [vmem:[%s1 + $0x54] sm:$0xf]
  %v38 = vld [vmem:[%s1 + $0x58] sm:$0xf]
  %v39 = vld [vmem:[%s1 + $0x5c] sm:$0xf]
  %v40 = vld [vmem:[%s1 + $0x60] sm:$0xf]
  %v41 = vld [vmem:[%s1 + $0x64] sm:$0xf]
  %v42 = vld [vmem:[%s1 + $0x68] sm:$0xf]
  %v43 = vld [vmem:[%s1 + $0x6c] sm:$0xf]
  %v44 = vld [vmem:[%s1 + $0x70] sm:$0xf]
  %v45 = vld [vmem:[%s1 + $0x74] sm:$0xf]
  %v46 = vld [vmem:[%s1 + $0x78] sm:$0xf]
  %v47 = vld [vmem:[%s1 + $0x7c] sm:$0xf]
  %v48 = vld [vmem:[%s1 + $0x80] sm:$0xf]
  %v49 = vld [vmem:[%s1 + $0x84] sm:$0xf]
  %v50 = vld [vmem:[%s1 + $0x88] sm:$0xf]
  %v51 = vld [vmem:[%s1 + $0x8c] sm:$0xf]
  %v52 = vld [vmem:[%s1 + $0x90] sm:$0xf]
  %v53 = vld [vmem:[%s1 + $0x94] sm:$0xf]
  %v54 = vld [vmem:[%s1 + $0x98] sm:$0xf]
  %v55 = vld [vmem:[%s1 + $0x9c] sm:$0xf]
  %v56 = vld [vmem:[%s1 + $0xa0] sm:$0xf]
  %v57 = vld [vmem:[%s1 + $0xa4] sm:$0xf]
  %v58 = vld [vmem:[%s1 + $0xa8] sm:$0xf]
  %v59 = vld [vmem:[%s1 + $0xac] sm:$0xf]
  %v60 = vld [vmem:[%s1 + $0xb0] sm:$0xf]
  %v61 = vld [vmem:[%s1 + $0xb4] sm:$0xf]
  %v62 = vld [vmem:[%s1 + $0xb8] sm:$0xf]
  %v63 = vld [vmem:[%s1 + $0xbc] sm:$0xf]
  %v64 = vld [vmem:[%s1 + $0xc0] sm:$0xf]
  %v65 = vld [vmem:[%s1 + $0xc4] sm:$0xf]
  %v66 = vld [vmem:[%s1 + $0xc8] sm:$0xf]
  %v67 = vld [vmem:[%s1 + $0xcc] sm:$0xf]
  %v68 = vld [vmem:[%s1 + $0xd0] sm:$0xf]
  %v69 = vld [vmem:[%s1 + $0xd4] sm:$0xf]
  %v70 = vld [vmem:[%s1 + $0xd8] sm:$0xf]
  %v71 = vld [vmem:[%s1 + $0xdc] sm:$0xf]
  %v72 = vld [vmem:[%s1 + $0xe0] sm:$0xf]
  %v73 = vld [vmem:[%s1 + $0xe4] sm:$0xf]
  %v74 = vld [vmem:[%s1 + $0xe8] sm:$0xf]
  %v75 = vld [vmem:[%s1 + $0xec] sm:$0xf]
  %v76 = vld [vmem:[%s1 + $0xf0] sm:$0xf]
  %v77 = vld [vmem:[%s1 + $0xf4] sm:$0xf]
  %v78 = vld [vmem:[%s1 + $0xf8] sm:$0xf]
  %v79 = vld [vmem:[%s1 + $0xfc] sm:$0xf]
  %v80 = vld [vmem:[%s1 + $0x100] sm:$0xf]
  %v81 = vld [vmem:[%s1 + $0x104] sm:$0xf]
  %v82 = vld [vmem:[%s1 + $0x108] sm:$0xf]
  %v83 = vld [vmem:[%s1 + $0x10c] sm:$0xf]
  %v84 = vld [vmem:[%s1 + $0x110] sm:$0xf]
  %v85 = vld [vmem:[%s1 + $0x114] sm:$0xf]
  %v86 = vld [vmem:[%s1 + $0x118] sm:$0xf]
  %v87 = vld [vmem:[%s1 + $0x11c] sm:$0xf]
  %v88 = vld [vmem:[%s2] sm:$0x1]
  %v90 = vlaneseq
  %v91 = vshrl.u32 %v90, 7
  %v92 = vsub.s32 0, %v91
  %v93 = vrot.slane %v88, %v92
  %v96 = vcombine.high %v15, %v15
  %v98 = vunpack.c.l.s4 1966171168
  %v99 = vunpack.c.0.s8 %v98
  %v100 = vlaneseq
  %v101 = vshrl.u32 %v100, 7
  %v102 = vsub.s32 %v99, %v101
  %v103 = vrot.slane %v15, %v102
  %v105 = vunpack.c.l.s4 1966171168
  %v106 = vunpack.c.0.s8 %v105
  %v107 = vlaneseq
  %v108 = vshrl.u32 %v107, 7
  %v109 = vsub.s32 %v106, %v108
  %v110 = vrot.slane %v96, %v109
  %v111 = vcombine.high %v103, %v103
  %v113 = vunpack.c.l.s4 1966171168
  %v114 = vunpack.c.0.s8 %v113
  %v115 = vlaneseq
  %v116 = vshrl.u32 %v115, 7
  %v117 = vsub.s32 %v114, %v116
  %v118 = vrot.slane %v103, %v117
  %v120 = vunpack.c.l.s4 1966171168
  %v121 = vunpack.c.0.s8 %v120
  %v122 = vlaneseq
  %v123 = vshrl.u32 %v122, 7
  %v124 = vsub.s32 %v121, %v123
  %v125 = vrot.slane %v110, %v124
  %v127 = vunpack.c.l.s4 1966171168
  %v128 = vunpack.c.0.s8 %v127
  %v129 = vlaneseq
  %v130 = vshrl.u32 %v129, 7
  %v131 = vsub.s32 %v128, %v130
  %v132 = vrot.slane %v111, %v131
  %v133 = vcombine.high %v118, %v118
  %v134 = vcombine.high %v132, %v132
  %v211 = vunpack.c.l.b16 %v16
  %v212 = vunpack.c.l.b16 %v17
  %v213 = vunpack.c.l.b16 %v18
  %v214 = vunpack.c.l.b16 %v19
  %v215 = vunpack.c.l.b16 %v20
  %v216 = vunpack.c.l.b16 %v21
  %v217 = vunpack.c.l.b16 %v22
  %v218 = vunpack.c.l.b16 %v23
  %v219 = vunpack.c.l.b16 %v24
  %v220 = vunpack.c.l.b16 %v25
  %v221 = vunpack.c.l.b16 %v26
  %v222 = vunpack.c.l.b16 %v27
  %v223 = vunpack.c.l.b16 %v28
  %v224 = vunpack.c.l.b16 %v29
  %v225 = vunpack.c.l.b16 %v30
  %v226 = vunpack.c.l.b16 %v31
  %v227 = vunpack.c.l.b16 %v32
  %v228 = vunpack.c.l.b16 %v33
  %v229 = vunpack.c.l.b16 %v34
  %v230 = vunpack.c.l.b16 %v35
  %v231 = vunpack.c.l.b16 %v36
  %v232 = vunpack.c.l.b16 %v37
  %v233 = vunpack.c.l.b16 %v38
  %v234 = vunpack.c.l.b16 %v39
  %v235 = vunpack.c.l.b16 %v40
  %v236 = vunpack.c.l.b16 %v41
  %v237 = vunpack.c.l.b16 %v42
  %v238 = vunpack.c.l.b16 %v43
  %v239 = vunpack.c.l.b16 %v44
  %v240 = vunpack.c.l.b16 %v45
  %v241 = vunpack.c.l.b16 %v46
  %v242 = vunpack.c.l.b16 %v47
  %v243 = vunpack.c.l.b16 %v48
  %v244 = vunpack.c.l.b16 %v49
  %v245 = vunpack.c.l.b16 %v50
  %v246 = vunpack.c.l.b16 %v51
  %v247 = vunpack.c.l.b16 %v52
  %v248 = vunpack.c.l.b16 %v53
  %v249 = vunpack.c.l.b16 %v54
  %v250 = vunpack.c.l.b16 %v55
  %v251 = vunpack.c.l.b16 %v56
  %v252 = vunpack.c.l.b16 %v57
  %v253 = vunpack.c.l.b16 %v58
  %v254 = vunpack.c.l.b16 %v59
  %v255 = vunpack.c.l.b16 %v60
  %v256 = vunpack.c.l.b16 %v61
  %v257 = vunpack.c.l.b16 %v62
  %v258 = vunpack.c.l.b16 %v63
  %v259 = vunpack.c.l.b16 %v64
  %v260 = vunpack.c.l.b16 %v65
  %v261 = vunpack.c.l.b16 %v66
  %v262 = vunpack.c.l.b16 %v67
  %v263 = vunpack.c.l.b16 %v68
  %v264 = vunpack.c.l.b16 %v69
  %v265 = vunpack.c.l.b16 %v70
  %v266 = vunpack.c.l.b16 %v71
  %v267 = vunpack.c.l.b16 %v72
  %v268 = vunpack.c.l.b16 %v73
  %v269 = vunpack.c.l.b16 %v74
  %v270 = vunpack.c.l.b16 %v75
  %v271 = vunpack.c.l.b16 %v76
  %v272 = vunpack.c.l.b16 %v77
  %v273 = vunpack.c.l.b16 %v78
  %v274 = vunpack.c.l.b16 %v79
  %v275 = vunpack.c.l.b16 %v80
  %v276 = vunpack.c.l.b16 %v81
  %v277 = vunpack.c.l.b16 %v82
  %v278 = vunpack.c.l.b16 %v83
  %v279 = vunpack.c.l.b16 %v84
  %v280 = vunpack.c.l.b16 %v85
  %v281 = vunpack.c.l.b16 %v86
  %v282 = vunpack.c.l.b16 %v87
  %v283 = vpack.c.b16 %v212, %v211
  %v284 = vpack.c.b16 %v214, %v213
  %v285 = vpack.c.b16 %v216, %v215
  %v286 = vpack.c.b16 %v218, %v217
  %v287 = vpack.c.b16 %v220, %v219
  %v288 = vpack.c.b16 %v222, %v221
  %v289 = vpack.c.b16 %v224, %v223
  %v290 = vpack.c.b16 %v226, %v225
  %v291 = vpack.c.b16 %v228, %v227
  %v292 = vpack.c.b16 %v230, %v229
  %v293 = vpack.c.b16 %v232, %v231
  %v294 = vpack.c.b16 %v234, %v233
  %v295 = vpack.c.b16 %v236, %v235
  %v296 = vpack.c.b16 %v238, %v237
  %v297 = vpack.c.b16 %v240, %v239
  %v298 = vpack.c.b16 %v242, %v241
  %v299 = vpack.c.b16 %v244, %v243
  %v300 = vpack.c.b16 %v246, %v245
  %v301 = vpack.c.b16 %v248, %v247
  %v302 = vpack.c.b16 %v250, %v249
  %v303 = vpack.c.b16 %v252, %v251
  %v304 = vpack.c.b16 %v254, %v253
  %v305 = vpack.c.b16 %v256, %v255
  %v306 = vpack.c.b16 %v258, %v257
  %v307 = vpack.c.b16 %v260, %v259
  %v308 = vpack.c.b16 %v262, %v261
  %v309 = vpack.c.b16 %v264, %v263
  %v310 = vpack.c.b16 %v266, %v265
  %v311 = vpack.c.b16 %v268, %v267
  %v312 = vpack.c.b16 %v270, %v269
  %v313 = vpack.c.b16 %v272, %v271
  %v314 = vpack.c.b16 %v274, %v273
  %v315 = vpack.c.b16 %v276, %v275
  %v316 = vpack.c.b16 %v278, %v277
  %v317 = vpack.c.b16 %v280, %v279
  %v318 = vpack.c.b16 %v282, %v281
  %vm355 = vcmask 523264
  %v357 = vsel %vm355, %v125, 0
  %359 = vmatprep.subr.bf16.mxu0 0
  %360 = vmatpush1.bf16.msra.mxu0 %v283
  %361 = vmatprep.subr.bf16.mxu0 0
  %362 = vmatpush1.bf16.msra.mxu0 %v284
  %363 = vmatprep.subr.bf16.mxu0 0
  %364 = vmatpush1.bf16.msra.mxu0 %v285
  %365 = vmatprep.subr.bf16.mxu0 0
  %366 = vmatpush1.bf16.msra.mxu0 %v286
  %367 = vmatprep.subr.bf16.mxu0 0
  %368 = vmatpush1.bf16.msra.mxu0 %v287
  %369 = vmatprep.subr.bf16.mxu0 0
  %370 = vmatpush1.bf16.msra.mxu0 %v288
  %371 = vmatprep.subr.bf16.mxu0 0
  %372 = vmatpush1.bf16.msra.mxu0 %v289
  %373 = vmatprep.subr.bf16.mxu0 0
  %374 = vmatpush1.bf16.msra.mxu0 %v290
  %375 = vmatprep.subr.bf16.mxu0 0
  %376 = vmatpush1.bf16.msra.mxu0 %v291
  %377 = vmatprep.subr.bf16.mxu0 0
  %378 = vmatpush1.bf16.msra.mxu0 %v292
  %379 = vmatprep.subr.bf16.mxu0 0
  %380 = vmatpush1.bf16.msra.mxu0 %v293
  %381 = vmatprep.subr.bf16.mxu0 0
  %382 = vmatpush1.bf16.msra.mxu0 %v294
  %383 = vmatprep.subr.bf16.mxu0 0
  %384 = vmatpush1.bf16.msra.mxu0 %v295
  %385 = vmatprep.subr.bf16.mxu0 0
  %386 = vmatpush1.bf16.msra.mxu0 %v296
  %387 = vmatprep.subr.bf16.mxu0 0
  %388 = vmatpush1.bf16.msra.mxu0 %v297
  %389 = vmatprep.subr.bf16.mxu0 0
  %390 = vmatpush1.bf16.msra.mxu0 %v298
  %391 = vmatprep.mubr.bf16.mxu0 %v132
  %392 = vmatmul.mubr.bf16.gmra.mrb[0].mxu0 %v118
  %v393 = vpop.f32.mrb[0].mxu0
  %v394 = vadd.f32 %v93, %v393
  %v395 = vpop.f32.mrb[0].mxu0
  %v396 = vpop.f32.mrb[0].mxu0
  %v397 = vpop.f32.mrb[0].mxu0
  %398 = vdwg.mxu0
  %399 = vmatprep.subr.bf16.mxu0 0
  %400 = vmatpush1.bf16.msra.mxu0 %v299
  %401 = vmatprep.subr.bf16.mxu0 0
  %402 = vmatpush1.bf16.msra.mxu0 %v300
  %403 = vmatprep.subr.bf16.mxu0 0
  %404 = vmatpush1.bf16.msra.mxu0 %v301
  %405 = vmatprep.subr.bf16.mxu0 0
  %406 = vmatpush1.bf16.msra.mxu0 %v302
  %407 = vmatprep.subr.bf16.mxu0 0
  %408 = vmatpush1.bf16.msra.mxu0 %v303
  %409 = vmatprep.subr.bf16.mxu0 0
  %410 = vmatpush1.bf16.msra.mxu0 %v304
  %411 = vmatprep.subr.bf16.mxu0 0
  %412 = vmatpush1.bf16.msra.mxu0 %v305
  %413 = vmatprep.subr.bf16.mxu0 0
  %414 = vmatpush1.bf16.msra.mxu0 %v306
  %415 = vmatprep.subr.bf16.mxu0 0
  %416 = vmatpush1.bf16.msra.mxu0 %v307
  %417 = vmatprep.subr.bf16.mxu0 0
  %418 = vmatpush1.bf16.msra.mxu0 %v308
  %419 = vmatprep.subr.bf16.mxu0 0
  %420 = vmatpush1.bf16.msra.mxu0 %v309
  %421 = vmatprep.subr.bf16.mxu0 0
  %422 = vmatpush1.bf16.msra.mxu0 %v310
  %423 = vmatprep.subr.bf16.mxu0 0
  %424 = vmatpush1.bf16.msra.mxu0 %v311
  %425 = vmatprep.subr.bf16.mxu0 0
  %426 = vmatpush1.bf16.msra.mxu0 %v312
  %427 = vmatprep.subr.bf16.mxu0 0
  %428 = vmatpush1.bf16.msra.mxu0 %v313
  %429 = vmatprep.subr.bf16.mxu0 0
  %430 = vmatpush1.bf16.msra.mxu0 %v314
  %431 = vmatprep.mubr.bf16.mxu0 %v134
  %432 = vmatmul.mubr.bf16.gmra.mrb[0].mxu0 %v133
  %v433 = vpop.f32.mrb[0].mxu0
  %v434 = vadd.f32 %v394, %v433
  %v435 = vpop.f32.mrb[0].mxu0
  %v436 = vpop.f32.mrb[0].mxu0
  %v437 = vpop.f32.mrb[0].mxu0
  %438 = vdwg.mxu0
  %439 = vmatprep.subr.bf16.mxu0 0
  %440 = vmatpush1.bf16.msra.mxu0 %v315
  %441 = vmatprep.subr.bf16.mxu0 0
  %442 = vmatpush1.bf16.msra.mxu0 %v316
  %443 = vmatprep.subr.bf16.mxu0 0
  %444 = vmatpush1.bf16.msra.mxu0 %v317
  %445 = vmatprep.subr.bf16.mxu0 0
  %446 = vmatpush1.bf16.msra.mxu0 %v318
  %447 = vmatprep.subr.bf16.mxu0 0
  %448 = vmatpush1.bf16.msra.mxu0 0
  %449 = vmatprep.subr.bf16.mxu0 0
  %450 = vmatpush1.bf16.msra.mxu0 0
  %451 = vmatprep.subr.bf16.mxu0 0
  %452 = vmatpush1.bf16.msra.mxu0 0
  %453 = vmatprep.subr.bf16.mxu0 0
  %454 = vmatpush1.bf16.msra.mxu0 0
  %455 = vmatprep.subr.bf16.mxu0 0
  %456 = vmatpush1.bf16.msra.mxu0 0
  %457 = vmatprep.subr.bf16.mxu0 0
  %458 = vmatpush1.bf16.msra.mxu0 0
  %459 = vmatprep.subr.bf16.mxu0 0
  %460 = vmatpush1.bf16.msra.mxu0 0
  %461 = vmatprep.subr.bf16.mxu0 0
  %462 = vmatpush1.bf16.msra.mxu0 0
  %463 = vmatprep.subr.bf16.mxu0 0
  %464 = vmatpush1.bf16.msra.mxu0 0
  %465 = vmatprep.subr.bf16.mxu0 0
  %466 = vmatpush1.bf16.msra.mxu0 0
  %467 = vmatprep.subr.bf16.mxu0 0
  %468 = vmatpush1.bf16.msra.mxu0 0
  %469 = vmatprep.subr.bf16.mxu0 0
  %470 = vmatpush1.bf16.msra.mxu0 0
  %471 = vmatprep.mubr.bf16.mxu0 0
  %472 = vmatmul.mubr.bf16.gmra.mrb[0].mxu0 %v357
  %v473 = vpop.f32.mrb[0].mxu0
  %v474 = vadd.f32 %v434, %v473
  %v475 = vpop.f32.mrb[0].mxu0
  %v476 = vpop.f32.mrb[0].mxu0
  %v477 = vpop.f32.mrb[0].mxu0
  %478 = vdwg.mxu0
  %v479 = vmax.f32 %v474, 0.0
  %v480 = vpack.c.bf16 %v479, %v479
  %vm481 = vcmask 516096
  %482 = vst.msk [vmem:[%s3] sm:$0x1] %vm481, %v480
  // Predicated region
  $region14: #{dqn_forward.6} parent=0 // pred_check
    _
  $region15: #{dqn_forward.6} parent=0 // pred_check_branch
    %484 = sbr.rel (0) target = $region17
  $region16: #{dqn_forward.6} parent=0 // pred_region
    _
  $region17: #{dqn_forward.6} parent=0 // pred_fallthru
    _
  // Predicated region
  $region18: #{dqn_forward.6} parent=0 // pred_check
    _
  $region19: #{dqn_forward.6} parent=0 // pred_check_branch
    %486 = sbr.rel (0) target = $region21
  $region20: #{dqn_forward.6} parent=0 // pred_region
    _
  $region21: #{dqn_forward.6} parent=0 // pred_fallthru
    _

// kernel: dqn_forward.7
$region0: #{dqn_forward.7}
  #allocation0 [shape = 'u32[]', space=smem, size = 0x4, offset = 0x4, fixed_abs, tag = 'smem constant byte address 0x4 - core index']
  #allocation1 [shape = 'u32[144,128]{1,0:T(1,128)}', space=vmem, size = 0x12000, scoped, tag = 'internal scratch']
  #allocation2 [shape = 'f32[1,1]{1,0:T(1,128)S(1)}', space=vmem, size = 0x200, scoped, tag = 'scoped memory for dqn_forward.7']
  %s0 = inlined_call_operand.vmem [shape: bf16[2,64], index: 0, kind: input, shape index: {}]
  %s1 = inlined_call_operand.vmem [shape: bf16[64,64], index: 1, kind: input, shape index: {}]
  %s2 = inlined_call_operand.vmem [shape: f32[1,64], index: 2, kind: input, shape index: {}]
  %s3 = inlined_call_operand.vmem [shape: bf16[64,64], index: 3, kind: input, shape index: {}]
  %s4 = inlined_call_operand.vmem [shape: f32[1,64], index: 4, kind: input, shape index: {}]
  %s5 = inlined_call_operand.vmem [shape: f32[1,64], index: 5, kind: input, shape index: {}]
  %s6 = inlined_call_operand.<no memory space> [shape: f32[1,1], index: 6, kind: input, shape index: {}]
  %s7 = inlined_call_operand.vmem [shape: bf16[64,64], index: 7, kind: input, shape index: {}]
  %s8 = inlined_call_operand.vmem [shape: f32[1,64], index: 8, kind: input, shape index: {}]
  %s9 = inlined_call_operand.vmem [shape: bf16[64,64], index: 9, kind: input, shape index: {}]
  %s10 = inlined_call_operand.vmem [shape: f32[1,64], index: 10, kind: input, shape index: {}]
  %s11 = inlined_call_operand.vmem [shape: bf16[64,4], index: 11, kind: input, shape index: {}]
  %s12 = inlined_call_operand.vmem [shape: f32[1,4], index: 12, kind: input, shape index: {}]
  %s13 = inlined_call_operand.hbm [shape: f32[2,4], index: 13, kind: output, shape index: {}]
  %s14 = sld [smem:[#allocation0]]
  $region62: #{dqn_forward.7} parent=0
    _
  %s16 = ssub.s32 1, %s14
  %s17 = scalar_select 0, %s16, %s14
  %v18 = vstv %s6
  %19 = vst [vmem:[#allocation2] sm:$0x1] %v18
  $region1: #{dqn_forward.7} parent=0
    #allocation3 [shape = 'u8[1024]{0}', space=vmem, size = 0x400, scoped, tag = 'output window, operand 0, single buffered']
    #allocation4 [shape = 's32[1]{0}', space=sflag, size = 0x4, scoped, tag = 'scoped memory for dqn_forward.7']
    %20 = vsyncpa [#allocation4], 0
    // Predicated region
    $region2: #{dqn_forward.7} parent=1 // pred_check
      _
    $region3: #{dqn_forward.7} parent=1 // pred_check_branch
      %22 = sbr.rel (0) target = $region5
    $region4: #{dqn_forward.7} parent=1 // pred_region
      _
    $region5: #{dqn_forward.7} parent=1 // pred_fallthru
      _
    // Predicated region
    $region6: #{dqn_forward.7} parent=1 // pred_check
      _
    $region7: #{dqn_forward.7} parent=1 // pred_check_branch
      %24 = sbr.rel (0) target = $region9
    $region8: #{dqn_forward.7} parent=1 // pred_region
      _
    $region9: #{dqn_forward.7} parent=1 // pred_fallthru
      _
    // Predicated region
    $region10: #{dqn_forward.7} parent=1 // pred_check
      _
    $region11: #{dqn_forward.7} parent=1 // pred_check_branch
      %26 = sbr.rel (0) target = $region13
    $region12: #{dqn_forward.7} parent=1 // pred_region
      _
    $region13: #{dqn_forward.7} parent=1 // pred_fallthru
      _
    // Predicated region
    $region14: #{dqn_forward.7} parent=1 // pred_check
      _
    $region15: #{dqn_forward.7} parent=1 // pred_check_branch
      %28 = sbr.rel (0) target = $region17
    $region16: #{dqn_forward.7} parent=1 // pred_region
      _
    $region17: #{dqn_forward.7} parent=1 // pred_fallthru
      _
    // Predicated region
    $region18: #{dqn_forward.7} parent=1 // pred_check
      _
    $region19: #{dqn_forward.7} parent=1 // pred_check_branch
      %30 = sbr.rel (0) target = $region21
    $region20: #{dqn_forward.7} parent=1 // pred_region
      _
    $region21: #{dqn_forward.7} parent=1 // pred_fallthru
      _
    // Predicated region
    $region22: #{dqn_forward.7} parent=1 // pred_check
      _
    $region23: #{dqn_forward.7} parent=1 // pred_check_branch
      %32 = sbr.rel (0) target = $region25
    $region24: #{dqn_forward.7} parent=1 // pred_region
      _
    $region25: #{dqn_forward.7} parent=1 // pred_fallthru
      _
    // Predicated region
    $region26: #{dqn_forward.7} parent=1 // pred_check
      _
    $region27: #{dqn_forward.7} parent=1 // pred_check_branch
      %34 = sbr.rel (0) target = $region29
    $region28: #{dqn_forward.7} parent=1 // pred_region
      _
    $region29: #{dqn_forward.7} parent=1 // pred_fallthru
      _
    // Predicated region
    $region30: #{dqn_forward.7} parent=1 // pred_check
      _
    $region31: #{dqn_forward.7} parent=1 // pred_check_branch
      %36 = sbr.rel (0) target = $region33
    $region32: #{dqn_forward.7} parent=1 // pred_region
      _
    $region33: #{dqn_forward.7} parent=1 // pred_fallthru
      _
    // Predicated region
    $region34: #{dqn_forward.7} parent=1 // pred_check
      _
    $region35: #{dqn_forward.7} parent=1 // pred_check_branch
      %38 = sbr.rel (0) target = $region37
    $region36: #{dqn_forward.7} parent=1 // pred_region
      _
    $region37: #{dqn_forward.7} parent=1 // pred_fallthru
      _
    // Predicated region
    $region38: #{dqn_forward.7} parent=1 // pred_check
      _
    $region39: #{dqn_forward.7} parent=1 // pred_check_branch
      %40 = sbr.rel (0) target = $region41
    $region40: #{dqn_forward.7} parent=1 // pred_region
      _
    $region41: #{dqn_forward.7} parent=1 // pred_fallthru
      _
    // Predicated region
    $region42: #{dqn_forward.7} parent=1 // pred_check
      _
    $region43: #{dqn_forward.7} parent=1 // pred_check_branch
      %42 = sbr.rel (0) target = $region45
    $region44: #{dqn_forward.7} parent=1 // pred_region
      _
    $region45: #{dqn_forward.7} parent=1 // pred_fallthru
      _
    // Predicated region
    $region46: #{dqn_forward.7} parent=1 // pred_check
      _
    $region47: #{dqn_forward.7} parent=1 // pred_check_branch
      %44 = sbr.rel (0) target = $region49
    $region48: #{dqn_forward.7} parent=1 // pred_region
      _
    $region49: #{dqn_forward.7} parent=1 // pred_fallthru
      _
    // Predicated region
    $region50: #{dqn_forward.7} parent=1 // pred_check
      _
    $region51: #{dqn_forward.7} parent=1 // pred_check_branch
      %46 = sbr.rel (0) target = $region53
    $region52: #{dqn_forward.7} parent=1 // pred_region
      _
    $region53: #{dqn_forward.7} parent=1 // pred_fallthru
      _
    %v48 = vld [vmem:[%s0] sm:$0x1]
    %v49 = vld [vmem:[%s1] sm:$0xf]
    %v50 = vld [vmem:[%s1 + $0x4] sm:$0xf]
    %v51 = vld [vmem:[%s1 + $0x8] sm:$0xf]
    %v52 = vld [vmem:[%s1 + $0xc] sm:$0xf]
    %v53 = vld [vmem:[%s1 + $0x10] sm:$0xf]
    %v54 = vld [vmem:[%s1 + $0x14] sm:$0xf]
    %v55 = vld [vmem:[%s1 + $0x18] sm:$0xf]
    %v56 = vld [vmem:[%s1 + $0x1c] sm:$0xf]
    %v57 = vld [vmem:[%s2] sm:$0x1]
    %v59 = vlaneseq
    %v60 = vshrl.u32 %v59, 7
    %v61 = vsub.s32 0, %v60
    %v62 = vrot.slane %v57, %v61
    %v72 = vunpack.c.l.b16 %v49
    %v73 = vunpack.c.l.b16 %v50
    %v74 = vunpack.c.l.b16 %v51
    %v75 = vunpack.c.l.b16 %v52
    %v76 = vunpack.c.l.b16 %v53
    %v77 = vunpack.c.l.b16 %v54
    %v78 = vunpack.c.l.b16 %v55
    %v79 = vunpack.c.l.b16 %v56
    %v80 = vpack.c.b16 %v73, %v72
    %v81 = vpack.c.b16 %v75, %v74
    %v82 = vpack.c.b16 %v77, %v76
    %v83 = vpack.c.b16 %v79, %v78
    %vm88 = vcmask 523264
    %v90 = vsel %vm88, %v48, 0
    %92 = vmatprep.subr.bf16.mxu0 0
    %93 = vmatpush1.bf16.msra.mxu0 %v80
    %94 = vmatprep.subr.bf16.mxu0 0
    %95 = vmatpush1.bf16.msra.mxu0 %v81
    %96 = vmatprep.subr.bf16.mxu0 0
    %97 = vmatpush1.bf16.msra.mxu0 %v82
    %98 = vmatprep.subr.bf16.mxu0 0
    %99 = vmatpush1.bf16.msra.mxu0 %v83
    %100 = vmatprep.subr.bf16.mxu0 0
    %101 = vmatpush1.bf16.msra.mxu0 0
    %102 = vmatprep.subr.bf16.mxu0 0
    %103 = vmatpush1.bf16.msra.mxu0 0
    %104 = vmatprep.subr.bf16.mxu0 0
    %105 = vmatpush1.bf16.msra.mxu0 0
    %106 = vmatprep.subr.bf16.mxu0 0
    %107 = vmatpush1.bf16.msra.mxu0 0
    %108 = vmatprep.subr.bf16.mxu0 0
    %109 = vmatpush1.bf16.msra.mxu0 0
    %110 = vmatprep.subr.bf16.mxu0 0
    %111 = vmatpush1.bf16.msra.mxu0 0
    %112 = vmatprep.subr.bf16.mxu0 0
    %113 = vmatpush1.bf16.msra.mxu0 0
    %114 = vmatprep.subr.bf16.mxu0 0
    %115 = vmatpush1.bf16.msra.mxu0 0
    %116 = vmatprep.subr.bf16.mxu0 0
    %117 = vmatpush1.bf16.msra.mxu0 0
    %118 = vmatprep.subr.bf16.mxu0 0
    %119 = vmatpush1.bf16.msra.mxu0 0
    %120 = vmatprep.subr.bf16.mxu0 0
    %121 = vmatpush1.bf16.msra.mxu0 0
    %122 = vmatprep.subr.bf16.mxu0 0
    %123 = vmatpush1.bf16.msra.mxu0 0
    %124 = vmatprep.mubr.bf16.mxu0 0
    %125 = vmatmul.mubr.bf16.gmra.mrb[0].mxu0 %v90
    %v126 = vpop.f32.mrb[0].mxu0
    %v127 = vadd.f32 %v62, %v126
    %v128 = vpop.f32.mrb[0].mxu0
    %v129 = vpop.f32.mrb[0].mxu0
    %v130 = vpop.f32.mrb[0].mxu0
    %131 = vdwg.mxu0
    %v132 = vmax.f32 %v127, 0.0
    %v133 = vpack.c.bf16 %v132, %v132
    %v134 = vld [vmem:[%s3] sm:$0xf]
    %v135 = vld [vmem:[%s3 + $0x4] sm:$0xf]
    %v136 = vld [vmem:[%s3 + $0x8] sm:$0xf]
    %v137 = vld [vmem:[%s3 + $0xc] sm:$0xf]
    %v138 = vld [vmem:[%s3 + $0x10] sm:$0xf]
    %v139 = vld [vmem:[%s3 + $0x14] sm:$0xf]
    %v140 = vld [vmem:[%s3 + $0x18] sm:$0xf]
    %v141 = vld [vmem:[%s3 + $0x1c] sm:$0xf]
    %v142 = vld [vmem:[%s4] sm:$0x1]
    %v144 = vlaneseq
    %v145 = vshrl.u32 %v144, 7
    %v146 = vsub.s32 0, %v145
    %v147 = vrot.slane %v142, %v146
    %v157 = vunpack.c.l.b16 %v134
    %v158 = vunpack.c.l.b16 %v135
    %v159 = vunpack.c.l.b16 %v136
    %v160 = vunpack.c.l.b16 %v137
    %v161 = vunpack.c.l.b16 %v138
    %v162 = vunpack.c.l.b16 %v139
    %v163 = vunpack.c.l.b16 %v140
    %v164 = vunpack.c.l.b16 %v141
    %v165 = vpack.c.b16 %v158, %v157
    %v166 = vpack.c.b16 %v160, %v159
    %v167 = vpack.c.b16 %v162, %v161
    %v168 = vpack.c.b16 %v164, %v163
    %v174 = vsel %vm88, %v133, 0
    %176 = vmatprep.subr.bf16.mxu0 0
    %177 = vmatpush1.bf16.msra.mxu0 %v165
    %178 = vmatprep.subr.bf16.mxu0 0
    %179 = vmatpush1.bf16.msra.mxu0 %v166
    %180 = vmatprep.subr.bf16.mxu0 0
    %181 = vmatpush1.bf16.msra.mxu0 %v167
    %182 = vmatprep.subr.bf16.mxu0 0
    %183 = vmatpush1.bf16.msra.mxu0 %v168
    %184 = vmatprep.subr.bf16.mxu0 0
    %185 = vmatpush1.bf16.msra.mxu0 0
    %186 = vmatprep.subr.bf16.mxu0 0
    %187 = vmatpush1.bf16.msra.mxu0 0
    %188 = vmatprep.subr.bf16.mxu0 0
    %189 = vmatpush1.bf16.msra.mxu0 0
    %190 = vmatprep.subr.bf16.mxu0 0
    %191 = vmatpush1.bf16.msra.mxu0 0
    %192 = vmatprep.subr.bf16.mxu0 0
    %193 = vmatpush1.bf16.msra.mxu0 0
    %194 = vmatprep.subr.bf16.mxu0 0
    %195 = vmatpush1.bf16.msra.mxu0 0
    %196 = vmatprep.subr.bf16.mxu0 0
    %197 = vmatpush1.bf16.msra.mxu0 0
    %198 = vmatprep.subr.bf16.mxu0 0
    %199 = vmatpush1.bf16.msra.mxu0 0
    %200 = vmatprep.subr.bf16.mxu0 0
    %201 = vmatpush1.bf16.msra.mxu0 0
    %202 = vmatprep.subr.bf16.mxu0 0
    %203 = vmatpush1.bf16.msra.mxu0 0
    %204 = vmatprep.subr.bf16.mxu0 0
    %205 = vmatpush1.bf16.msra.mxu0 0
    %206 = vmatprep.subr.bf16.mxu0 0
    %207 = vmatpush1.bf16.msra.mxu0 0
    %208 = vmatprep.mubr.bf16.mxu0 0
    %209 = vmatmul.mubr.bf16.gmra.mrb[0].mxu0 %v174
    %v210 = vpop.f32.mrb[0].mxu0
    %v211 = vadd.f32 %v147, %v210
    %v212 = vpop.f32.mrb[0].mxu0
    %v213 = vpop.f32.mrb[0].mxu0
    %v214 = vpop.f32.mrb[0].mxu0
    %215 = vdwg.mxu0
    %v216 = vmax.f32 %v211, 0.0
    %v217 = vld [vmem:[%s5] sm:$0x1]
    %v219 = vlaneseq
    %v220 = vshrl.u32 %v219, 7
    %v221 = vsub.s32 0, %v220
    %v222 = vrot.slane %v217, %v221
    %v224 = vmul.f32 %v216, %v222
    %vm225 = vcmask 517120
    %v226 = vsel %vm225, %v224, 0.0
    %227 = vadd.xlane.f32.xlu0 %v226
    %v228 = vpop.xlane.xlu0 %227
    %v229 = vld [vmem:[#allocation2] sm:$0x1]
    %v231 = vlaneseq
    %v232 = vshrl.u32 %v231, 7
    %v233 = vsub.s32 0, %v232
    %v234 = vrot.slane %v229, %v233
    %v236 = vadd.f32 %v228, %v234
    %v237 = vld [vmem:[%s7] sm:$0xf]
    %v238 = vld [vmem:[%s7 + $0x4] sm:$0xf]
    %v239 = vld [vmem:[%s7 + $0x8] sm:$0xf]
    %v240 = vld [vmem:[%s7 + $0xc] sm:$0xf]
    %v241 = vld [vmem:[%s7 + $0x10] sm:$0xf]
    %v242 = vld [vmem:[%s7 + $0x14] sm:$0xf]
    %v243 = vld [vmem:[%s7 + $0x18] sm:$0xf]
    %v244 = vld [vmem:[%s7 + $0x1c] sm:$0xf]
    %v245 = vld [vmem:[%s8] sm:$0x1]
    %v247 = vlaneseq
    %v248 = vshrl.u32 %v247, 7
    %v249 = vsub.s32 0, %v248
    %v250 = vrot.slane %v245, %v249
    %v260 = vunpack.c.l.b16 %v237
    %v261 = vunpack.c.l.b16 %v238
    %v262 = vunpack.c.l.b16 %v239
    %v263 = vunpack.c.l.b16 %v240
    %v264 = vunpack.c.l.b16 %v241
    %v265 = vunpack.c.l.b16 %v242
    %v266 = vunpack.c.l.b16 %v243
    %v267 = vunpack.c.l.b16 %v244
    %v268 = vpack.c.b16 %v261, %v260
    %v269 = vpack.c.b16 %v263, %v262
    %v270 = vpack.c.b16 %v265, %v264
    %v271 = vpack.c.b16 %v267, %v266
    %276 = vmatprep.subr.bf16.mxu0 0
    %277 = vmatpush1.bf16.msra.mxu0 %v268
    %278 = vmatprep.subr.bf16.mxu0 0
    %279 = vmatpush1.bf16.msra.mxu0 %v269
    %280 = vmatprep.subr.bf16.mxu0 0
    %281 = vmatpush1.bf16.msra.mxu0 %v270
    %282 = vmatprep.subr.bf16.mxu0 0
    %283 = vmatpush1.bf16.msra.mxu0 %v271
    %284 = vmatprep.subr.bf16.mxu0 0
    %285 = vmatpush1.bf16.msra.mxu0 0
    %286 = vmatprep.subr.bf16.mxu0 0
    %287 = vmatpush1.bf16.msra.mxu0 0
    %288 = vmatprep.subr.bf16.mxu0 0
    %289 = vmatpush1.bf16.msra.mxu0 0
    %290 = vmatprep.subr.bf16.mxu0 0
    %291 = vmatpush1.bf16.msra.mxu0 0
    %292 = vmatprep.subr.bf16.mxu0 0
    %293 = vmatpush1.bf16.msra.mxu0 0
    %294 = vmatprep.subr.bf16.mxu0 0
    %295 = vmatpush1.bf16.msra.mxu0 0
    %296 = vmatprep.subr.bf16.mxu0 0
    %297 = vmatpush1.bf16.msra.mxu0 0
    %298 = vmatprep.subr.bf16.mxu0 0
    %299 = vmatpush1.bf16.msra.mxu0 0
    %300 = vmatprep.subr.bf16.mxu0 0
    %301 = vmatpush1.bf16.msra.mxu0 0
    %302 = vmatprep.subr.bf16.mxu0 0
    %303 = vmatpush1.bf16.msra.mxu0 0
    %304 = vmatprep.subr.bf16.mxu0 0
    %305 = vmatpush1.bf16.msra.mxu0 0
    %306 = vmatprep.subr.bf16.mxu0 0
    %307 = vmatpush1.bf16.msra.mxu0 0
    %308 = vmatprep.mubr.bf16.mxu0 0
    %309 = vmatmul.mubr.bf16.gmra.mrb[0].mxu0 %v90
    %v310 = vpop.f32.mrb[0].mxu0
    %v311 = vadd.f32 %v250, %v310
    %v312 = vpop.f32.mrb[0].mxu0
    %v313 = vpop.f32.mrb[0].mxu0
    %v314 = vpop.f32.mrb[0].mxu0
    %315 = vdwg.mxu0
    %v316 = vmax.f32 %v311, 0.0
    %v317 = vpack.c.bf16 %v316, %v316
    %v318 = vld [vmem:[%s9] sm:$0xf]
    %v319 = vld [vmem:[%s9 + $0x4] sm:$0xf]
    %v320 = vld [vmem:[%s9 + $0x8] sm:$0xf]
    %v321 = vld [vmem:[%s9 + $0xc] sm:$0xf]
    %v322 = vld [vmem:[%s9 + $0x10] sm:$0xf]
    %v323 = vld [vmem:[%s9 + $0x14] sm:$0xf]
    %v324 = vld [vmem:[%s9 + $0x18] sm:$0xf]
    %v325 = vld [vmem:[%s9 + $0x1c] sm:$0xf]
    %v326 = vld [vmem:[%s10] sm:$0x1]
    %v328 = vlaneseq
    %v329 = vshrl.u32 %v328, 7
    %v330 = vsub.s32 0, %v329
    %v331 = vrot.slane %v326, %v330
    %v341 = vunpack.c.l.b16 %v318
    %v342 = vunpack.c.l.b16 %v319
    %v343 = vunpack.c.l.b16 %v320
    %v344 = vunpack.c.l.b16 %v321
    %v345 = vunpack.c.l.b16 %v322
    %v346 = vunpack.c.l.b16 %v323
    %v347 = vunpack.c.l.b16 %v324
    %v348 = vunpack.c.l.b16 %v325
    %v349 = vpack.c.b16 %v342, %v341
    %v350 = vpack.c.b16 %v344, %v343
    %v351 = vpack.c.b16 %v346, %v345
    %v352 = vpack.c.b16 %v348, %v347
    %v358 = vsel %vm88, %v317, 0
    %360 = vmatprep.subr.bf16.mxu0 0
    %361 = vmatpush1.bf16.msra.mxu0 %v349
    %362 = vmatprep.subr.bf16.mxu0 0
    %363 = vmatpush1.bf16.msra.mxu0 %v350
    %364 = vmatprep.subr.bf16.mxu0 0
    %365 = vmatpush1.bf16.msra.mxu0 %v351
    %366 = vmatprep.subr.bf16.mxu0 0
    %367 = vmatpush1.bf16.msra.mxu0 %v352
    %368 = vmatprep.subr.bf16.mxu0 0
    %369 = vmatpush1.bf16.msra.mxu0 0
    %370 = vmatprep.subr.bf16.mxu0 0
    %371 = vmatpush1.bf16.msra.mxu0 0
    %372 = vmatprep.subr.bf16.mxu0 0
    %373 = vmatpush1.bf16.msra.mxu0 0
    %374 = vmatprep.subr.bf16.mxu0 0
    %375 = vmatpush1.bf16.msra.mxu0 0
    %376 = vmatprep.subr.bf16.mxu0 0
    %377 = vmatpush1.bf16.msra.mxu0 0
    %378 = vmatprep.subr.bf16.mxu0 0
    %379 = vmatpush1.bf16.msra.mxu0 0
    %380 = vmatprep.subr.bf16.mxu0 0
    %381 = vmatpush1.bf16.msra.mxu0 0
    %382 = vmatprep.subr.bf16.mxu0 0
    %383 = vmatpush1.bf16.msra.mxu0 0
    %384 = vmatprep.subr.bf16.mxu0 0
    %385 = vmatpush1.bf16.msra.mxu0 0
    %386 = vmatprep.subr.bf16.mxu0 0
    %387 = vmatpush1.bf16.msra.mxu0 0
    %388 = vmatprep.subr.bf16.mxu0 0
    %389 = vmatpush1.bf16.msra.mxu0 0
    %390 = vmatprep.subr.bf16.mxu0 0
    %391 = vmatpush1.bf16.msra.mxu0 0
    %392 = vmatprep.mubr.bf16.mxu0 0
    %393 = vmatmul.mubr.bf16.gmra.mrb[0].mxu0 %v358
    %v394 = vpop.f32.mrb[0].mxu0
    %v395 = vadd.f32 %v331, %v394
    %v396 = vpop.f32.mrb[0].mxu0
    %v397 = vpop.f32.mrb[0].mxu0
    %v398 = vpop.f32.mrb[0].mxu0
    %399 = vdwg.mxu0
    %v400 = vmax.f32 %v395, 0.0
    %v401 = vpack.c.bf16 %v400, %v400
    %v402 = vld [vmem:[%s11] sm:$0xf]
    %v403 = vld [vmem:[%s11 + $0x4] sm:$0xf]
    %v404 = vld [vmem:[%s11 + $0x8] sm:$0xf]
    %v405 = vld [vmem:[%s11 + $0xc] sm:$0xf]
    %v406 = vld [vmem:[%s11 + $0x10] sm:$0xf]
    %v407 = vld [vmem:[%s11 + $0x14] sm:$0xf]
    %v408 = vld [vmem:[%s11 + $0x18] sm:$0xf]
    %v409 = vld [vmem:[%s11 + $0x1c] sm:$0xf]
    %v410 = vld [vmem:[%s12] sm:$0x1]
    %v412 = vlaneseq
    %v413 = vshrl.u32 %v412, 7
    %v414 = vsub.s32 0, %v413
    %v415 = vrot.slane %v410, %v414
    %v425 = vunpack.c.l.b16 %v402
    %v426 = vunpack.c.l.b16 %v403
    %v427 = vunpack.c.l.b16 %v404
    %v428 = vunpack.c.l.b16 %v405
    %v429 = vunpack.c.l.b16 %v406
    %v430 = vunpack.c.l.b16 %v407
    %v431 = vunpack.c.l.b16 %v408
    %v432 = vunpack.c.l.b16 %v409
    %v433 = vpack.c.b16 %v426, %v425
    %v434 = vpack.c.b16 %v428, %v427
    %v435 = vpack.c.b16 %v430, %v429
    %v436 = vpack.c.b16 %v432, %v431
    %v442 = vsel %vm88, %v401, 0
    %444 = vmatprep.subr.bf16.mxu0 0
    %445 = vmatpush1.bf16.msra.mxu0 %v433
    %446 = vmatprep.subr.bf16.mxu0 0
    %447 = vmatpush1.bf16.msra.mxu0 %v434
    %448 = vmatprep.subr.bf16.mxu0 0
    %449 = vmatpush1.bf16.msra.mxu0 %v435
    %450 = vmatprep.subr.bf16.mxu0 0
    %451 = vmatpush1.bf16.msra.mxu0 %v436
    %452 = vmatprep.subr.bf16.mxu0 0
    %453 = vmatpush1.bf16.msra.mxu0 0
    %454 = vmatprep.subr.bf16.mxu0 0
    %455 = vmatpush1.bf16.msra.mxu0 0
    %456 = vmatprep.subr.bf16.mxu0 0
    %457 = vmatpush1.bf16.msra.mxu0 0
    %458 = vmatprep.subr.bf16.mxu0 0
    %459 = vmatpush1.bf16.msra.mxu0 0
    %460 = vmatprep.subr.bf16.mxu0 0
    %461 = vmatpush1.bf16.msra.mxu0 0
    %462 = vmatprep.subr.bf16.mxu0 0
    %463 = vmatpush1.bf16.msra.mxu0 0
    %464 = vmatprep.subr.bf16.mxu0 0
    %465 = vmatpush1.bf16.msra.mxu0 0
    %466 = vmatprep.subr.bf16.mxu0 0
    %467 = vmatpush1.bf16.msra.mxu0 0
    %468 = vmatprep.subr.bf16.mxu0 0
    %469 = vmatpush1.bf16.msra.mxu0 0
    %470 = vmatprep.subr.bf16.mxu0 0
    %471 = vmatpush1.bf16.msra.mxu0 0
    %472 = vmatprep.subr.bf16.mxu0 0
    %473 = vmatpush1.bf16.msra.mxu0 0
    %474 = vmatprep.subr.bf16.mxu0 0
    %475 = vmatpush1.bf16.msra.mxu0 0
    %476 = vmatprep.mubr.bf16.mxu0 0
    %477 = vmatmul.mubr.bf16.gmra.mrb[0].mxu0 %v442
    %v478 = vpop.f32.mrb[0].mxu0
    %v479 = vadd.f32 %v415, %v478
    %v480 = vpop.f32.mrb[0].mxu0
    %v481 = vpop.f32.mrb[0].mxu0
    %v482 = vpop.f32.mrb[0].mxu0
    %483 = vdwg.mxu0
    %485 = vset.pattern.permute.xlu0 0
    %486 = vperm.xlu0 %485, %v236
    %v487 = vpop.permute.xlu0 %486
    %v489 = vadd.f32 %v487, %v479
    %vm490 = vcmask 25600
    %v491 = vsel %vm490, %v479, 0.0
    %492 = vadd.xlane.f32.xlu0 %v491
    %v493 = vpop.xlane.xlu0 %492
    %v494 = vrcp.pop 4.0
    %v495 = vmul.f32 %v493, %v494
    %v496 = vsub.f32 %v489, %v495
    %497 = vst.msk [vmem:[#allocation3] sm:$0x3] %vm490, %v496
    // Predicated region
    $region54: #{dqn_forward.7} parent=1 // pred_check
      _
    $region55: #{dqn_forward.7} parent=1 // pred_check_branch
      %499 = sbr.rel (0) target = $region57
    $region56: #{dqn_forward.7} parent=1 // pred_region
      %s501 = ssub.s32 32, 32
      %502 = vsyncadd [#allocation4], %s501
      %s504 = sshll.u32 [#allocation3], 4
      %s505 = int_to_ptr.vmem [resolvable:$true] %s504
      %507 = dma.vmem_to_hbm [thread:$0]  %s505, 32, %s13, [#allocation4]
    $region57: #{dqn_forward.7} parent=1 // pred_fallthru
      _
    // Predicated region
    $region58: #{dqn_forward.7} parent=1 // pred_check
      _
    $region59: #{dqn_forward.7} parent=1 // pred_check_branch
      %509 = sbr.rel (0) target = $region61
    $region60: #{dqn_forward.7} parent=1 // pred_region
      %510 = dma.done [#allocation4], 32
    $region61: #{dqn_forward.7} parent=1 // pred_fallthru
      _
    %511 = vsyncpa [#allocation4], 1

</llo_original>
